<compile_context>
chip_gen: v7x
topology: tpu7x:2x2x1
jax: 0.10.0
libtpu: 0.0.40
codegen_flags: <defaults>
</compile_context>

<pallas_src>
import jax
import jax.numpy as jnp
from jax.experimental import pallas as pl
from jax.experimental.pallas import tpu as pltpu


# ----------------------------------------------------------------------------
# Hardware-aware knobs (guarded; safe fallbacks everywhere)
# ----------------------------------------------------------------------------
def _vmem_limit_bytes() -> int:
    cap = 64 * 1024 * 1024                       # conservative (v7x per-TC VMEM)
    try:
        cap = int(getattr(pltpu.get_tpu_info(), "vmem_capacity_bytes", cap))
    except Exception:
        pass
    return min(cap * 3 // 4, 96 * 1024 * 1024)


def _attn_n_blocks(padded_batch: int) -> int:
    """2 batch blocks only on multi-TensorCore chips (megacore sharding) and
    only when each block keeps >= 8 sublanes; 1 on single-TC v5e / v6e."""
    kind = ""
    try:
        kind = jax.devices()[0].device_kind.lower()
    except Exception:
        pass
    multi_tc = any(tag in kind for tag in ("v7", "7x", "v4", "v5p"))
    return 2 if (multi_tc and padded_batch % 16 == 0) else 1


def _to_batch_major(x):
    """(T, B, H) -> (B, T, H): one in-VMEM (XLU) leading-dims transpose."""
    try:
        return pltpu.einshape("tbh->bth", x)
    except Exception:                           # fallback if helper unavailable
        return jnp.swapaxes(x, 0, 1)


# ----------------------------------------------------------------------------
# GRU kernel: grid=(2,) -> encoder / decoder; input projection hoisted, the
# recurrence is a dynamically-bounded pl.loop carrying h in a VMEM scratch.
# ----------------------------------------------------------------------------
def _gru_pair_kernel(tlen_ref, lens_ref, x_ref, wx_ref, wh_ref, bx_ref,
                     bhn_ref, out_ref, gx_ref, h_ref):
    g = pl.program_id(0)
    B = out_ref.shape[2]
    Hp = out_ref.shape[3]

    lens = lens_ref[0]                       # (B, 1) int32 per-sample lengths
    wh = wh_ref[0]                           # (Hp, 3Hp) bf16
    bhn = bhn_ref[0]                         # (1, Hp)  f32 (h-side n-gate bias)

    # ---- hoisted input projection: one (T*B, D) @ (D, 3Hp) bf16 matmul ----
    # (off the serial h-dependence chain; x-side gate biases folded in here)
    gx_ref[...] = (jnp.dot(x_ref[0], wx_ref[0],
                           preferred_element_type=jnp.float32)
                   + bx_ref[0])                                   # (T*B, 3Hp)

    h_ref[...] = jnp.zeros_like(h_ref)       # h0 = 0

    t_len = tlen_ref[g]                      # actual time extent (Th or Ts)

    @pl.loop(0, t_len)                       # dynamic bound -> no wasted steps
    def _step(t):
        h = h_ref[...]                                            # (B, Hp) f32
        row = pl.multiple_of(t * B, B)
        gx_t = gx_ref[pl.ds(row, B), :]                           # (B, 3Hp)
        gh = jnp.dot(h.astype(jnp.bfloat16), wh,
                     preferred_element_type=jnp.float32)          # (B, 3Hp)
        # PyTorch gate order r, z, n; Hp is a multiple of 128 so every slice
        # below is lane-aligned.
        rz = jax.nn.sigmoid(gx_t[:, :2 * Hp] + gh[:, :2 * Hp])
        r = rz[:, :Hp]
        z = rz[:, Hp:]
        n = jnp.tanh(gx_t[:, 2 * Hp:] + r * (gh[:, 2 * Hp:] + bhn))
        h_new = (1.0 - z) * n + z * h

        # pack/pad semantics: emit zeros and freeze h past each sample length
        valid = (t < lens).astype(jnp.float32)                    # (B, 1)
        h_emit = valid * h_new
        out_ref[0, t] = h_emit                                    # (8,128) store
        h_ref[...] = h_emit + (1.0 - valid) * h


def gru_pair(tlens, lens, xs2d, wx, wh, bx, bhn, T, B):
    """Encoder GRU (history) + decoder GRU (current traj) in one pallas_call.

    tlens: (2,) int32 [Th, Ts] scalar-prefetch time extents.
    lens:  (2, B, 1) int32.  xs2d: (2, T*B, D) bf16 time-major flattened input.
    wx: (2, D, 3Hp) bf16, wh: (2, Hp, 3Hp) bf16,
    bx: (2, 1, 3Hp) f32, bhn: (2, 1, Hp) f32.
    -> (2, T, B, Hp) f32 time-major hidden outputs."""
    G = 2
    TB, D = xs2d.shape[1], xs2d.shape[2]
    Hp = wh.shape[1]
    H3 = wx.shape[2]
    # TODO(synk): at production T*B, tile the time axis (second "arbitrary"
    # grid axis, hidden state kept in the VMEM scratch) so the (T*B, D) input
    # and (T*B, 3Hp) scratch stay inside v7x's 64 MiB VMEM.
    return pl.pallas_call(
        _gru_pair_kernel,
        out_shape=jax.ShapeDtypeStruct((G, T, B, Hp), jnp.float32),
        grid_spec=pltpu.PrefetchScalarGridSpec(
            num_scalar_prefetch=1,
            grid=(G,),
            in_specs=[
                pl.BlockSpec((1, B, 1), lambda g, tl: (g, 0, 0)),    # lengths
                pl.BlockSpec((1, TB, D), lambda g, tl: (g, 0, 0)),   # x (bf16)
                pl.BlockSpec((1, D, H3), lambda g, tl: (g, 0, 0)),   # W_ih^T
                pl.BlockSpec((1, Hp, H3), lambda g, tl: (g, 0, 0)),  # W_hh^T
                pl.BlockSpec((1, 1, H3), lambda g, tl: (g, 0, 0)),   # x-side b
                pl.BlockSpec((1, 1, Hp), lambda g, tl: (g, 0, 0)),   # b_hn
            ],
            out_specs=pl.BlockSpec((1, T, B, Hp), lambda g, tl: (g, 0, 0, 0)),
            scratch_shapes=[pltpu.VMEM((TB, H3), jnp.float32),   # hoisted gx
                            pltpu.VMEM((B, Hp), jnp.float32)],   # hidden carry
        ),
        compiler_params=pltpu.CompilerParams(
            dimension_semantics=("parallel",),    # enc/dec on separate TCs (v7x)
            vmem_limit_bytes=_vmem_limit_bytes()),
    )(tlens, lens, xs2d, wx, wh, bx, bhn)


# ----------------------------------------------------------------------------
# Fused dot-attention + context + fc_final + log_softmax kernel.
# Consumes the GRU's time-major output directly (no HBM transpose between
# kernels); one in-VMEM transpose per hidden tensor at kernel entry.
# ----------------------------------------------------------------------------
def _attn_fc_kernel(hs_ref, hh_ref, w_ref, b_ref, out_ref):
    hs = hs_ref[0]                           # (Ts, Bb, Hp) f32, time-major
    hh = hh_ref[0]                           # (Th, Bb, Hp) f32, time-major
    Ts, Bb, Hp = hs.shape
    L = out_ref.shape[-1]

    hs_bm = _to_batch_major(hs)              # (Bb, Ts, Hp)
    hh_bm = _to_batch_major(hh)              # (Bb, Th, Hp)
    hs_b = hs_bm.astype(jnp.bfloat16)
    hh_b = hh_bm.astype(jnp.bfloat16)

    # dot-attention energies; softmax is NOT masked over padded history rows
    # (faithful to the reference implementation).
    e = jax.lax.dot_general(hs_b, hh_b, (((2,), (2,)), ((0,), (0,))),
                            preferred_element_type=jnp.float32)   # (Bb,Ts,Th)
    e = e - jnp.max(e, axis=-1, keepdims=True)
    p = jnp.exp(e)
    attn = p / jnp.sum(p, axis=-1, keepdims=True)

    # context = attn @ history
    ctx = jax.lax.dot_general(attn.astype(jnp.bfloat16), hh_b,
                              (((2,), (1,)), ((0,), (0,))),
                              preferred_element_type=jnp.float32)  # (Bb,Ts,Hp)

    # fc_final on concat([hidden_state, context]) as one flattened matmul pair
    w = w_ref[...]                                                 # (2Hp, L) bf16
    hs2 = hs_bm.reshape(Bb * Ts, Hp).astype(jnp.bfloat16)
    ctx2 = ctx.reshape(Bb * Ts, Hp).astype(jnp.bfloat16)
    y = (jnp.dot(hs2, w[:Hp, :], preferred_element_type=jnp.float32)
         + jnp.dot(ctx2, w[Hp:, :], preferred_element_type=jnp.float32)
         + b_ref[...])                                             # (Bb*Ts, L)

    # log_softmax over loc_size
    y = y - jnp.max(y, axis=-1, keepdims=True)
    lse = jnp.log(jnp.sum(jnp.exp(y), axis=-1, keepdims=True))
    out_ref[...] = (y - lse).reshape(Bb, Ts, L).astype(out_ref.dtype)


def attn_fc_logsoftmax(hidden, Ts, Th, w_final, b_final):
    """hidden: (2, T_max, Bp, Hp) f32 time-major GRU outputs
       ([0]=encoder/history, [1]=decoder/state); w_final: (2Hp, L) bf16;
       b_final: (1, L) f32 -> (Bp, Ts, L) f32 log-probs."""
    _, _, Bp, Hp = hidden.shape
    L = w_final.shape[1]
    n_blocks = _attn_n_blocks(Bp)
    Bb = Bp // n_blocks
    # TODO(synk): for production loc_size (tens of thousands) add an
    # "arbitrary" L grid axis streaming (2Hp, L_tile) weight tiles (L_tile a
    # large multiple of 128) with a two-pass online logsumexp (running row-max
    # / sum-exp in VMEM scratch, pl.when init/finalize) -- mandatory to fit
    # v7x's 64 MiB VMEM.  At the toy L used here the full weight fits.
    return pl.pallas_call(
        _attn_fc_kernel,
        out_shape=jax.ShapeDtypeStruct((Bp, Ts, L), jnp.float32),
        grid=(n_blocks,),
        in_specs=[
            # decoder (hidden_state) and encoder (hidden_history) windows are
            # read straight out of the same time-major GRU output array.
            pl.BlockSpec((1, Ts, Bb, Hp), lambda i: (1, 0, i, 0)),
            pl.BlockSpec((1, Th, Bb, Hp), lambda i: (0, 0, i, 0)),
            pl.BlockSpec((2 * Hp, L), lambda i: (0, 0)),
            pl.BlockSpec((1, L), lambda i: (0, 0)),
        ],
        out_specs=pl.BlockSpec((Bb, Ts, L), lambda i: (i, 0, 0)),
        compiler_params=pltpu.CompilerParams(
            dimension_semantics=("parallel",),
            vmem_limit_bytes=_vmem_limit_bytes()),
    )(hidden, hidden, w_final, b_final)


# ----------------------------------------------------------------------------
# Full forward (embedding lookups / padding are glue JAX)
# ----------------------------------------------------------------------------
@jax.jit
def trajpre_local_attn_long_forward(kp, loc, tim, history_loc, history_tim,
                                    loc_len, history_len):
    B, Ts = loc.shape
    _, Th = history_loc.shape
    B_pad = -(-B // 8) * 8                  # pad batch to 8 sublanes
    T_max = max(Ts, Th)

    # Embeddings built directly time-major by permuting the (tiny) int index
    # arrays; no feature-tensor transposes feed the GRU.
    x = jnp.concatenate([jnp.take(kp["emb_loc"], loc.T, axis=0),
                         jnp.take(kp["emb_tim"], tim.T, axis=0)],
                        axis=-1)                                   # (Ts, B, D)
    hx = jnp.concatenate([jnp.take(kp["emb_loc"], history_loc.T, axis=0),
                          jnp.take(kp["emb_tim"], history_tim.T, axis=0)],
                         axis=-1)                                  # (Th, B, D)
    # nn.Dropout is identity at inference -> no-op.
    # TODO(synk): training-mode dropout would need pltpu.prng_* masks.

    def pad_tb(a, t_to):   # pad time to T_max and batch to B_pad with zeros
        return jnp.pad(a, ((0, t_to - a.shape[0]),
                           (0, B_pad - a.shape[1]), (0, 0)))

    # (2, T_max*B_pad, D) bf16: host-side flatten keeps the in-kernel hoisted
    # projection a plain 2-D matmul; bf16 halves the HBM stream into the GRU.
    xs = jnp.stack([pad_tb(hx, T_max), pad_tb(x, T_max)]).astype(jnp.bfloat16)
    xs2d = xs.reshape(2, T_max * B_pad, xs.shape[-1])
    lens = jnp.stack(
        [jnp.pad(history_len.astype(jnp.int32), (0, B_pad - B)),
         jnp.pad(loc_len.astype(jnp.int32), (0, B_pad - B))])[:, :, None]
    tlens = jnp.array([Th, Ts], jnp.int32)   # per-program time extents (SMEM)

    # encoder GRU (history) + decoder GRU (current traj) in one pallas_call
    hidden = gru_pair(tlens, lens, xs2d, kp["gru_wx"], kp["gru_wh"],
                      kp["gru_bx"], kp["gru_bhn"], T_max, B_pad)

    # dot-attention + context + fc_final + log_softmax (fused kernel) reads
    # the time-major hidden states directly -> no HBM transpose in between.
    score = attn_fc_logsoftmax(hidden, Ts, Th, kp["fc_w"], kp["fc_b"])
    return score[:B]


# ----------------------------------------------------------------------------
# Parameters: PyTorch layout -> kernel layout
# ----------------------------------------------------------------------------
def make_params(key, loc_size, tim_size, loc_emb_size, tim_emb_size, hidden):
    D = loc_emb_size + tim_emb_size
    ks = jax.random.split(key, 8)

    def xavier(k, shape):
        fan_in, fan_out = shape[1], shape[0]
        bound = (6.0 / (fan_in + fan_out)) ** 0.5
        return jax.random.uniform(k, shape, jnp.float32, -bound, bound)

    return {
        "emb_loc": jax.random.normal(ks[0], (loc_size, loc_emb_size),
                                     jnp.float32) * 0.1,
        "emb_tim": jax.random.normal(ks[1], (tim_size, tim_emb_size),
                                     jnp.float32) * 0.1,
        # GRU encoder / decoder (PyTorch gate order r, z, n); biases init to 0
        "enc_w_ih": xavier(ks[2], (3 * hidden, D)),
        "enc_w_hh": xavier(ks[3], (3 * hidden, hidden)),
        "enc_b_ih": jnp.zeros((3 * hidden,), jnp.float32),
        "enc_b_hh": jnp.zeros((3 * hidden,), jnp.float32),
        "dec_w_ih": xavier(ks[4], (3 * hidden, D)),
        "dec_w_hh": xavier(ks[5], (3 * hidden, hidden)),
        "dec_b_ih": jnp.zeros((3 * hidden,), jnp.float32),
        "dec_b_hh": jnp.zeros((3 * hidden,), jnp.float32),
        # fc_final: PyTorch layout (loc_size, 2H)
        "fc_final_w": xavier(ks[6], (loc_size, 2 * hidden)),
        "fc_final_b": jnp.zeros((loc_size,), jnp.float32),
    }


def prepare_kernel_params(p):
    """PyTorch layout -> kernel layout: pre-transposed, gate blocks zero-padded
    to a lane-dense Hp (multiple of 128), matmul operands cast to bf16."""
    H = p["enc_w_hh"].shape[1]
    Hp = -(-H // 128) * 128

    def pad_gate_cols(w):                    # (rows, 3H) -> (rows, 3Hp)
        rows = w.shape[0]
        return jnp.pad(w.reshape(rows, 3, H),
                       ((0, 0), (0, 0), (0, Hp - H))).reshape(rows, 3 * Hp)

    def pad_h(v):                            # (H,) -> (Hp,)
        return jnp.pad(v, (0, Hp - H))

    def pack(w_ih, w_hh, b_ih, b_hh):
        wx = pad_gate_cols(w_ih.T)                                   # (D, 3Hp)
        wh = jnp.pad(pad_gate_cols(w_hh.T), ((0, Hp - H), (0, 0)))   # (Hp, 3Hp)
        # x-side bias with the r/z h-side biases merged in; the n-gate h-side
        # bias stays separate (it sits inside r * (W_hn h + b_hn)).
        bx = jnp.concatenate([pad_h(b_ih[:H] + b_hh[:H]),
                              pad_h(b_ih[H:2 * H] + b_hh[H:2 * H]),
                              pad_h(b_ih[2 * H:])])                  # (3Hp,)
        bhn = pad_h(b_hh[2 * H:])                                    # (Hp,)
        return wx.astype(jnp.bfloat16), wh.astype(jnp.bfloat16), bx, bhn

    ewx, ewh, ebx, ebhn = pack(p["enc_w_ih"], p["enc_w_hh"],
                               p["enc_b_ih"], p["enc_b_hh"])
    dwx, dwh, dbx, dbhn = pack(p["dec_w_ih"], p["dec_w_hh"],
                               p["dec_b_ih"], p["dec_b_hh"])

    W = p["fc_final_w"]                                   # (L, 2H)
    w1 = jnp.pad(W[:, :H].T, ((0, Hp - H), (0, 0)))       # hidden_state part
    w2 = jnp.pad(W[:, H:].T, ((0, Hp - H), (0, 0)))       # context part

    return {
        "emb_loc": p["emb_loc"],
        "emb_tim": p["emb_tim"],
        "gru_wx": jnp.stack([ewx, dwx]),                  # (2, D, 3Hp) bf16
        "gru_wh": jnp.stack([ewh, dwh]),                  # (2, Hp, 3Hp) bf16
        "gru_bx": jnp.stack([ebx, dbx])[:, None, :],      # (2, 1, 3Hp) f32
        "gru_bhn": jnp.stack([ebhn, dbhn])[:, None, :],   # (2, 1, Hp) f32
        "fc_w": jnp.concatenate([w1, w2], axis=0).astype(jnp.bfloat16),
        "fc_b": p["fc_final_b"][None, :],                 # (1, L) f32
    }


if __name__ == "__main__":
    key = jax.random.PRNGKey(0)

    B, Ts, Th = 4, 8, 12              # batch, current seq len, history seq len
    loc_size, tim_size = 128, 48
    loc_emb_size, tim_emb_size = 32, 16
    hidden = 32                       # padded to Hp=128 inside the kernels

    kpk, k1, k2, k3, k4 = jax.random.split(key, 5)
    torch_params = make_params(kpk, loc_size, tim_size,
                               loc_emb_size, tim_emb_size, hidden)
    kparams = prepare_kernel_params(torch_params)

    loc = jax.random.randint(k1, (B, Ts), 0, loc_size, jnp.int32)
    tim = jax.random.randint(k2, (B, Ts), 0, tim_size, jnp.int32)
    history_loc = jax.random.randint(k3, (B, Th), 0, loc_size, jnp.int32)
    history_tim = jax.random.randint(k4, (B, Th), 0, tim_size, jnp.int32)
    loc_len = jnp.array([Ts, Ts, Ts - 2, Ts - 3], jnp.int32)
    history_len = jnp.array([Th, Th - 1, Th, Th - 4], jnp.int32)

    score = trajpre_local_attn_long_forward(
        kparams, loc, tim, history_loc, history_tim, loc_len, history_len)
    score = jax.block_until_ready(score)

    assert score.shape == (B, Ts, loc_size)
    assert bool(jnp.all(jnp.isfinite(score)))
    print("KERNEL_OK")
</pallas_src>

<mosaic_0001>
module attributes {stable_mosaic.version = 11 : i64} {
  func.func @_attn_fc_kernel(%arg0: i32, %arg1: memref<1x8x8x128xf32, #tpu.memory_space<vmem>>, %arg2: memref<1x12x8x128xf32, #tpu.memory_space<vmem>>, %arg3: memref<256x128xbf16, #tpu.memory_space<vmem>>, %arg4: memref<1x128xf32, #tpu.memory_space<vmem>>, %arg5: memref<8x8x128xf32, #tpu.memory_space<vmem>>) attributes {dimension_semantics = [#tpu.dimension_semantics<parallel>], iteration_bounds = array<i64: 1>, scalar_prefetch = 0 : i64, scratch_operands = 0 : i64, tpu.core_type = #tpu.core_type<tc>, window_params = [{transform_indices = @transform_0, window_bounds = array<i64: 1, 8, 8, 128>}, {transform_indices = @transform_1, window_bounds = array<i64: 1, 12, 8, 128>}, {pipeline_mode = #tpu.pipeline_mode<synchronous>, transform_indices = @transform_2, window_bounds = array<i64: 256, 128>}, {pipeline_mode = #tpu.pipeline_mode<synchronous>, transform_indices = @transform_3, window_bounds = array<i64: 1, 128>}, {transform_indices = @transform_4, window_bounds = array<i64: 8, 8, 128>}]} {
    %c0 = arith.constant 0 : index
    %c0_0 = arith.constant 0 : index
    %c0_1 = arith.constant 0 : index
    %c0_2 = arith.constant 0 : index
    %0 = vector.load %arg1[%c0, %c0_0, %c0_1, %c0_2] : memref<1x8x8x128xf32, #tpu.memory_space<vmem>>, vector<1x8x8x128xf32>
    %1 = vector.shape_cast %0 : vector<1x8x8x128xf32> to vector<8x8x128xf32>
    %c0_3 = arith.constant 0 : index
    %c0_4 = arith.constant 0 : index
    %c0_5 = arith.constant 0 : index
    %c0_6 = arith.constant 0 : index
    %2 = vector.load %arg2[%c0_3, %c0_4, %c0_5, %c0_6] : memref<1x12x8x128xf32, #tpu.memory_space<vmem>>, vector<1x12x8x128xf32>
    %3 = vector.shape_cast %2 : vector<1x12x8x128xf32> to vector<12x8x128xf32>
    %4 = tpu.transpose %1, [1, 0, 2] : vector<8x8x128xf32> -> vector<8x8x128xf32>
    %5 = tpu.transpose %3, [1, 0, 2] : vector<12x8x128xf32> -> vector<8x12x128xf32>
    %6 = arith.truncf %4 : vector<8x8x128xf32> to vector<8x8x128xbf16>
    %7 = arith.truncf %5 : vector<8x12x128xf32> to vector<8x12x128xbf16>
    %cst = arith.constant dense<0.000000e+00> : vector<8x8x12xf32>
    %8 = tpu.matmul %6, %7, %cst {dimension_numbers = #tpu.dot_dimension_numbers<[2], [2], [1], [1], [0, 0, 0, 1, 1, 1], [0], [0]>} : vector<8x8x128xbf16>, vector<8x12x128xbf16>, vector<8x8x12xf32> -> vector<8x8x12xf32>
    %cst_7 = arith.constant dense<0xFF800000> : vector<8x8xf32>
    %9 = vector.multi_reduction <maximumf>, %8, %cst_7 [2] : vector<8x8x12xf32> to vector<8x8xf32>
    %10 = vector.shape_cast %9 : vector<8x8xf32> to vector<8x8x1xf32>
    %11 = vector.broadcast %10 : vector<8x8x1xf32> to vector<8x8x12xf32>
    %12 = arith.subf %8, %11 : vector<8x8x12xf32>
    %13 = math.exp %12 : vector<8x8x12xf32>
    %cst_8 = arith.constant dense<0.000000e+00> : vector<8x8xf32>
    %14 = vector.multi_reduction <add>, %13, %cst_8 [2] : vector<8x8x12xf32> to vector<8x8xf32>
    %15 = vector.shape_cast %14 : vector<8x8xf32> to vector<8x8x1xf32>
    %16 = vector.broadcast %15 : vector<8x8x1xf32> to vector<8x8x12xf32>
    %17 = arith.divf %13, %16 : vector<8x8x12xf32>
    %18 = arith.truncf %17 : vector<8x8x12xf32> to vector<8x8x12xbf16>
    %cst_9 = arith.constant dense<0.000000e+00> : vector<8x8x128xf32>
    %19 = tpu.matmul %18, %7, %cst_9 {dimension_numbers = #tpu.dot_dimension_numbers<[2], [1], [1], [2], [0, 0, 0, 1, 1, 2], [0], [0]>} : vector<8x8x12xbf16>, vector<8x12x128xbf16>, vector<8x8x128xf32> -> vector<8x8x128xf32>
    %c0_10 = arith.constant 0 : index
    %c0_11 = arith.constant 0 : index
    %20 = vector.load %arg3[%c0_10, %c0_11] : memref<256x128xbf16, #tpu.memory_space<vmem>>, vector<256x128xbf16>
    %21 = vector.shape_cast %4 : vector<8x8x128xf32> to vector<64x128xf32>
    %22 = arith.truncf %21 : vector<64x128xf32> to vector<64x128xbf16>
    %23 = vector.shape_cast %19 : vector<8x8x128xf32> to vector<64x128xf32>
    %24 = arith.truncf %23 : vector<64x128xf32> to vector<64x128xbf16>
    %25 = vector.extract_strided_slice %20 {offsets = [0, 0], sizes = [128, 128], strides = [1, 1]} : vector<256x128xbf16> to vector<128x128xbf16>
    %cst_12 = arith.constant dense<0.000000e+00> : vector<64x128xf32>
    %26 = tpu.matmul %22, %25, %cst_12 {dimension_numbers = #tpu.dot_dimension_numbers<[1], [0], [0], [1], [0, 0, 1, 1], [], []>} : vector<64x128xbf16>, vector<128x128xbf16>, vector<64x128xf32> -> vector<64x128xf32>
    %27 = vector.extract_strided_slice %20 {offsets = [128, 0], sizes = [128, 128], strides = [1, 1]} : vector<256x128xbf16> to vector<128x128xbf16>
    %cst_13 = arith.constant dense<0.000000e+00> : vector<64x128xf32>
    %28 = tpu.matmul %24, %27, %cst_13 {dimension_numbers = #tpu.dot_dimension_numbers<[1], [0], [0], [1], [0, 0, 1, 1], [], []>} : vector<64x128xbf16>, vector<128x128xbf16>, vector<64x128xf32> -> vector<64x128xf32>
    %29 = arith.addf %26, %28 : vector<64x128xf32>
    %c0_14 = arith.constant 0 : index
    %c0_15 = arith.constant 0 : index
    %30 = vector.load %arg4[%c0_14, %c0_15] : memref<1x128xf32, #tpu.memory_space<vmem>>, vector<1x128xf32>
    %31 = vector.broadcast %30 : vector<1x128xf32> to vector<64x128xf32>
    %32 = arith.addf %29, %31 : vector<64x128xf32>
    %cst_16 = arith.constant dense<0xFF800000> : vector<64xf32>
    %33 = vector.multi_reduction <maximumf>, %32, %cst_16 [1] : vector<64x128xf32> to vector<64xf32>
    %34 = vector.shape_cast %33 : vector<64xf32> to vector<64x1xf32>
    %35 = vector.broadcast %34 : vector<64x1xf32> to vector<64x128xf32>
    %36 = arith.subf %32, %35 : vector<64x128xf32>
    %37 = math.exp %36 : vector<64x128xf32>
    %cst_17 = arith.constant dense<0.000000e+00> : vector<64xf32>
    %38 = vector.multi_reduction <add>, %37, %cst_17 [1] : vector<64x128xf32> to vector<64xf32>
    %39 = vector.shape_cast %38 : vector<64xf32> to vector<64x1xf32>
    %40 = math.log %39 : vector<64x1xf32>
    %41 = vector.broadcast %40 : vector<64x1xf32> to vector<64x128xf32>
    %42 = arith.subf %36, %41 : vector<64x128xf32>
    %43 = vector.shape_cast %42 : vector<64x128xf32> to vector<8x8x128xf32>
    %c0_18 = arith.constant 0 : index
    %c0_19 = arith.constant 0 : index
    %c0_20 = arith.constant 0 : index
    %44 = vector.load %arg5[%c0_18, %c0_19, %c0_20] : memref<8x8x128xf32, #tpu.memory_space<vmem>>, vector<8x8x128xf32>
    tpu.vector_store %arg5[%c0_18, %c0_19, %c0_20], %43 {strides = array<i32>} : memref<8x8x128xf32, #tpu.memory_space<vmem>>, vector<8x8x128xf32>,
    return
  }
  func.func @transform_0(%arg0: i32) -> (i32, i32, i32, i32) {
    %c1_i32 = arith.constant 1 : i32
    %c0_i32 = arith.constant 0 : i32
    %c0_i32_0 = arith.constant 0 : i32
    %c0_i32_1 = arith.constant 0 : i32
    return %c1_i32, %c0_i32, %arg0, %c0_i32_0 : i32, i32, i32, i32
  }
  func.func @transform_1(%arg0: i32) -> (i32, i32, i32, i32) {
    %c0_i32 = arith.constant 0 : i32
    %c0_i32_0 = arith.constant 0 : i32
    %c0_i32_1 = arith.constant 0 : i32
    %c0_i32_2 = arith.constant 0 : i32
    return %c0_i32, %c0_i32_0, %arg0, %c0_i32_1 : i32, i32, i32, i32
  }
  func.func @transform_2(%arg0: i32) -> (i32, i32) {
    %c0_i32 = arith.constant 0 : i32
    %c0_i32_0 = arith.constant 0 : i32
    %c0_i32_1 = arith.constant 0 : i32
    return %c0_i32, %c0_i32_0 : i32, i32
  }
  func.func @transform_3(%arg0: i32) -> (i32, i32) {
    %c0_i32 = arith.constant 0 : i32
    %c0_i32_0 = arith.constant 0 : i32
    %c0_i32_1 = arith.constant 0 : i32
    return %c0_i32, %c0_i32_0 : i32, i32
  }
  func.func @transform_4(%arg0: i32) -> (i32, i32, i32) {
    %c0_i32 = arith.constant 0 : i32
    %c0_i32_0 = arith.constant 0 : i32
    %c0_i32_1 = arith.constant 0 : i32
    return %arg0, %c0_i32, %c0_i32_0 : i32, i32, i32
  }
}

module attributes {stable_mosaic.version = 11 : i64} {
  func.func @_gru_pair_kernel(%arg0: i32, %arg1: memref<2xi32, #tpu.memory_space<smem>>, %arg2: memref<1x8x1xi32, #tpu.memory_space<vmem>>, %arg3: memref<1x96x48xbf16, #tpu.memory_space<vmem>>, %arg4: memref<1x48x384xbf16, #tpu.memory_space<vmem>>, %arg5: memref<1x128x384xbf16, #tpu.memory_space<vmem>>, %arg6: memref<1x1x384xf32, #tpu.memory_space<vmem>>, %arg7: memref<1x1x128xf32, #tpu.memory_space<vmem>>, %arg8: memref<1x12x8x128xf32, #tpu.memory_space<vmem>>, %arg9: memref<96x384xf32, #tpu.memory_space<vmem>>, %arg10: memref<8x128xf32, #tpu.memory_space<vmem>>) attributes {dimension_semantics = [#tpu.dimension_semantics<parallel>], iteration_bounds = array<i64: 2>, scalar_prefetch = 1 : i64, scratch_operands = 2 : i64, tpu.core_type = #tpu.core_type<tc>, window_params = [{transform_indices = @transform_0, window_bounds = array<i64: 1, 8, 1>}, {transform_indices = @transform_1, window_bounds = array<i64: 1, 96, 48>}, {transform_indices = @transform_2, window_bounds = array<i64: 1, 48, 384>}, {transform_indices = @transform_3, window_bounds = array<i64: 1, 128, 384>}, {transform_indices = @transform_4, window_bounds = array<i64: 1, 1, 384>}, {transform_indices = @transform_5, window_bounds = array<i64: 1, 1, 128>}, {transform_indices = @transform_6, window_bounds = array<i64: 1, 12, 8, 128>}]} {
    %c0 = arith.constant 0 : index
    %c0_0 = arith.constant 0 : index
    %c0_1 = arith.constant 0 : index
    %0 = vector.load %arg2[%c0, %c0_0, %c0_1] : memref<1x8x1xi32, #tpu.memory_space<vmem>>, vector<1x8x1xi32>
    %1 = vector.shape_cast %0 : vector<1x8x1xi32> to vector<8x1xi32>
    %c0_2 = arith.constant 0 : index
    %c0_3 = arith.constant 0 : index
    %c0_4 = arith.constant 0 : index
    %2 = vector.load %arg5[%c0_2, %c0_3, %c0_4] : memref<1x128x384xbf16, #tpu.memory_space<vmem>>, vector<1x128x384xbf16>
    %3 = vector.shape_cast %2 : vector<1x128x384xbf16> to vector<128x384xbf16>
    %c0_5 = arith.constant 0 : index
    %c0_6 = arith.constant 0 : index
    %c0_7 = arith.constant 0 : index
    %4 = vector.load %arg7[%c0_5, %c0_6, %c0_7] : memref<1x1x128xf32, #tpu.memory_space<vmem>>, vector<1x1x128xf32>
    %5 = vector.shape_cast %4 : vector<1x1x128xf32> to vector<1x128xf32>
    %c0_8 = arith.constant 0 : index
    %c0_9 = arith.constant 0 : index
    %c0_10 = arith.constant 0 : index
    %6 = vector.load %arg3[%c0_8, %c0_9, %c0_10] : memref<1x96x48xbf16, #tpu.memory_space<vmem>>, vector<1x96x48xbf16>
    %7 = vector.shape_cast %6 : vector<1x96x48xbf16> to vector<96x48xbf16>
    %c0_11 = arith.constant 0 : index
    %c0_12 = arith.constant 0 : index
    %c0_13 = arith.constant 0 : index
    %8 = vector.load %arg4[%c0_11, %c0_12, %c0_13] : memref<1x48x384xbf16, #tpu.memory_space<vmem>>, vector<1x48x384xbf16>
    %9 = vector.shape_cast %8 : vector<1x48x384xbf16> to vector<48x384xbf16>
    %cst = arith.constant dense<0.000000e+00> : vector<96x384xf32>
    %10 = tpu.matmul %7, %9, %cst {dimension_numbers = #tpu.dot_dimension_numbers<[1], [0], [0], [1], [0, 0, 1, 1], [], []>} : vector<96x48xbf16>, vector<48x384xbf16>, vector<96x384xf32> -> vector<96x384xf32>
    %c0_14 = arith.constant 0 : index
    %c0_15 = arith.constant 0 : index
    %c0_16 = arith.constant 0 : index
    %11 = vector.load %arg6[%c0_14, %c0_15, %c0_16] : memref<1x1x384xf32, #tpu.memory_space<vmem>>, vector<1x1x384xf32>
    %12 = vector.shape_cast %11 : vector<1x1x384xf32> to vector<1x384xf32>
    %13 = vector.broadcast %12 : vector<1x384xf32> to vector<96x384xf32>
    %14 = arith.addf %10, %13 : vector<96x384xf32>
    %c0_17 = arith.constant 0 : index
    %c0_18 = arith.constant 0 : index
    %15 = vector.load %arg9[%c0_17, %c0_18] : memref<96x384xf32, #tpu.memory_space<vmem>>, vector<96x384xf32>
    tpu.vector_store %arg9[%c0_17, %c0_18], %14 {strides = array<i32>} : memref<96x384xf32, #tpu.memory_space<vmem>>, vector<96x384xf32>,
    %cst_19 = arith.constant 0.000000e+00 : f32
    %16 = vector.broadcast %cst_19 : f32 to vector<8x128xf32>
    %c0_20 = arith.constant 0 : index
    %c0_21 = arith.constant 0 : index
    %17 = vector.load %arg10[%c0_20, %c0_21] : memref<8x128xf32, #tpu.memory_space<vmem>>, vector<8x128xf32>
    tpu.vector_store %arg10[%c0_20, %c0_21], %16 {strides = array<i32>} : memref<8x128xf32, #tpu.memory_space<vmem>>, vector<8x128xf32>,
    %18 = arith.index_cast %arg0 : i32 to index
    %19 = memref.load %arg1[%18] : memref<2xi32, #tpu.memory_space<smem>>
    %c0_i32 = arith.constant 0 : i32
    %20 = arith.subi %19, %c0_i32 : i32
    %c1_i32 = arith.constant 1 : i32
    %c1_i32_22 = arith.constant 1 : i32
    %21 = arith.subi %c1_i32, %c1_i32_22 : i32
    %22 = arith.addi %20, %21 : i32
    %c1_i32_23 = arith.constant 1 : i32
    %23 = arith.divsi %22, %c1_i32_23 : i32
    %c1_i32_24 = arith.constant 1 : i32
    %c0_i32_25 = arith.constant 0 : i32
    %c0_i32_26 = arith.constant 0 : i32
    %24 = arith.subi %23, %c0_i32_26 : i32
    %25 = arith.addi %c0_i32_26, %24 : i32
    %c1_i32_27 = arith.constant 1 : i32
    scf.for %arg11 = %c0_i32_26 to %25 step %c1_i32_27  : i32 {
      %26 = arith.muli %arg11, %c1_i32_24 : i32
      %27 = arith.addi %c0_i32_25, %26 : i32
      %c0_28 = arith.constant 0 : index
      %c0_29 = arith.constant 0 : index
      %28 = vector.load %arg10[%c0_28, %c0_29] : memref<8x128xf32, #tpu.memory_space<vmem>>, vector<8x128xf32>
      %c8_i32 = arith.constant 8 : i32
      %29 = arith.muli %27, %c8_i32 : i32
      %30 = tpu.assume_multiple %29, 8 : i32
      %31 = arith.index_cast %30 : i32 to index
      %c0_30 = arith.constant 0 : index
      %32 = vector.load %arg9[%31, %c0_30] : memref<96x384xf32, #tpu.memory_space<vmem>>, vector<8x384xf32>
      %33 = arith.truncf %28 : vector<8x128xf32> to vector<8x128xbf16>
      %cst_31 = arith.constant dense<0.000000e+00> : vector<8x384xf32>
      %34 = tpu.matmul %33, %3, %cst_31 {dimension_numbers = #tpu.dot_dimension_numbers<[1], [0], [0], [1], [0, 0, 1, 1], [], []>} : vector<8x128xbf16>, vector<128x384xbf16>, vector<8x384xf32> -> vector<8x384xf32>
      %35 = vector.extract_strided_slice %32 {offsets = [0, 0], sizes = [8, 256], strides = [1, 1]} : vector<8x384xf32> to vector<8x256xf32>
      %36 = vector.extract_strided_slice %34 {offsets = [0, 0], sizes = [8, 256], strides = [1, 1]} : vector<8x384xf32> to vector<8x256xf32>
      %37 = arith.addf %35, %36 : vector<8x256xf32>
      %38 = arith.negf %37 : vector<8x256xf32>
      %39 = math.exp %38 : vector<8x256xf32>
      %cst_32 = arith.constant 1.000000e+00 : f32
      %40 = vector.broadcast %cst_32 : f32 to vector<8x256xf32>
      %41 = arith.addf %40, %39 : vector<8x256xf32>
      %42 = arith.divf %40, %41 : vector<8x256xf32>
      %43 = vector.extract_strided_slice %42 {offsets = [0, 0], sizes = [8, 128], strides = [1, 1]} : vector<8x256xf32> to vector<8x128xf32>
      %44 = vector.extract_strided_slice %42 {offsets = [0, 128], sizes = [8, 128], strides = [1, 1]} : vector<8x256xf32> to vector<8x128xf32>
      %45 = vector.extract_strided_slice %32 {offsets = [0, 256], sizes = [8, 128], strides = [1, 1]} : vector<8x384xf32> to vector<8x128xf32>
      %46 = vector.extract_strided_slice %34 {offsets = [0, 256], sizes = [8, 128], strides = [1, 1]} : vector<8x384xf32> to vector<8x128xf32>
      %47 = vector.broadcast %5 : vector<1x128xf32> to vector<8x128xf32>
      %48 = arith.addf %46, %47 : vector<8x128xf32>
      %49 = arith.mulf %43, %48 : vector<8x128xf32>
      %50 = arith.addf %45, %49 : vector<8x128xf32>
      %51 = math.tanh %50 : vector<8x128xf32>
      %cst_33 = arith.constant 1.000000e+00 : f32
      %52 = vector.broadcast %cst_33 : f32 to vector<8x128xf32>
      %53 = arith.subf %52, %44 : vector<8x128xf32>
      %54 = arith.mulf %53, %51 : vector<8x128xf32>
      %55 = arith.mulf %44, %28 : vector<8x128xf32>
      %56 = arith.addf %54, %55 : vector<8x128xf32>
      %57 = vector.broadcast %27 : i32 to vector<8x1xi32>
      %58 = arith.cmpi slt, %57, %1 : vector<8x1xi32>
      %59 = arith.extui %58 : vector<8x1xi1> to vector<8x1xi32>
      %60 = arith.sitofp %59 : vector<8x1xi32> to vector<8x1xf32>
      %61 = vector.broadcast %60 : vector<8x1xf32> to vector<8x128xf32>
      %62 = arith.mulf %61, %56 : vector<8x128xf32>
      %c0_34 = arith.constant 0 : index
      %63 = arith.index_cast %27 : i32 to index
      %c0_35 = arith.constant 0 : index
      %c0_36 = arith.constant 0 : index
      %64 = vector.load %arg8[%c0_34, %63, %c0_35, %c0_36] : memref<1x12x8x128xf32, #tpu.memory_space<vmem>>, vector<1x1x8x128xf32>
      %65 = vector.shape_cast %64 : vector<1x1x8x128xf32> to vector<8x128xf32>
      %66 = vector.shape_cast %62 : vector<8x128xf32> to vector<1x1x8x128xf32>
      tpu.vector_store %arg8[%c0_34, %63, %c0_35, %c0_36], %66 {strides = array<i32>} : memref<1x12x8x128xf32, #tpu.memory_space<vmem>>, vector<1x1x8x128xf32>,
      %cst_37 = arith.constant 1.000000e+00 : f32
      %67 = vector.broadcast %cst_37 : f32 to vector<8x1xf32>
      %68 = arith.subf %67, %60 : vector<8x1xf32>
      %69 = vector.broadcast %68 : vector<8x1xf32> to vector<8x128xf32>
      %70 = arith.mulf %69, %28 : vector<8x128xf32>
      %71 = arith.addf %62, %70 : vector<8x128xf32>
      %c0_38 = arith.constant 0 : index
      %c0_39 = arith.constant 0 : index
      %72 = vector.load %arg10[%c0_38, %c0_39] : memref<8x128xf32, #tpu.memory_space<vmem>>, vector<8x128xf32>
      tpu.vector_store %arg10[%c0_38, %c0_39], %71 {strides = array<i32>} : memref<8x128xf32, #tpu.memory_space<vmem>>, vector<8x128xf32>,
    }
    return
  }
  func.func @transform_0(%arg0: i32, %arg1: memref<2xi32, #tpu.memory_space<smem>>) -> (i32, i32, i32) {
    %c0_i32 = arith.constant 0 : i32
    %c0_i32_0 = arith.constant 0 : i32
    %c0_i32_1 = arith.constant 0 : i32
    return %arg0, %c0_i32, %c0_i32_0 : i32, i32, i32
  }
  func.func @transform_1(%arg0: i32, %arg1: memref<2xi32, #tpu.memory_space<smem>>) -> (i32, i32, i32) {
    %c0_i32 = arith.constant 0 : i32
    %c0_i32_0 = arith.constant 0 : i32
    %c0_i32_1 = arith.constant 0 : i32
    return %arg0, %c0_i32, %c0_i32_0 : i32, i32, i32
  }
  func.func @transform_2(%arg0: i32, %arg1: memref<2xi32, #tpu.memory_space<smem>>) -> (i32, i32, i32) {
    %c0_i32 = arith.constant 0 : i32
    %c0_i32_0 = arith.constant 0 : i32
    %c0_i32_1 = arith.constant 0 : i32
    return %arg0, %c0_i32, %c0_i32_0 : i32, i32, i32
  }
  func.func @transform_3(%arg0: i32, %arg1: memref<2xi32, #tpu.memory_space<smem>>) -> (i32, i32, i32) {
    %c0_i32 = arith.constant 0 : i32
    %c0_i32_0 = arith.constant 0 : i32
    %c0_i32_1 = arith.constant 0 : i32
    return %arg0, %c0_i32, %c0_i32_0 : i32, i32, i32
  }
  func.func @transform_4(%arg0: i32, %arg1: memref<2xi32, #tpu.memory_space<smem>>) -> (i32, i32, i32) {
    %c0_i32 = arith.constant 0 : i32
    %c0_i32_0 = arith.constant 0 : i32
    %c0_i32_1 = arith.constant 0 : i32
    return %arg0, %c0_i32, %c0_i32_0 : i32, i32, i32
  }
  func.func @transform_5(%arg0: i32, %arg1: memref<2xi32, #tpu.memory_space<smem>>) -> (i32, i32, i32) {
    %c0_i32 = arith.constant 0 : i32
    %c0_i32_0 = arith.constant 0 : i32
    %c0_i32_1 = arith.constant 0 : i32
    return %arg0, %c0_i32, %c0_i32_0 : i32, i32, i32
  }
  func.func @transform_6(%arg0: i32, %arg1: memref<2xi32, #tpu.memory_space<smem>>) -> (i32, i32, i32, i32) {
    %c0_i32 = arith.constant 0 : i32
    %c0_i32_0 = arith.constant 0 : i32
    %c0_i32_1 = arith.constant 0 : i32
    %c0_i32_2 = arith.constant 0 : i32
    return %arg0, %c0_i32, %c0_i32_0, %c0_i32_1 : i32, i32, i32, i32
  }
}

</mosaic_0001>

<llo_original>
// kernel: trajpre_local_attn_long_forward.3
$region0: #{trajpre_local_attn_long_forward.3}
  #allocation0 [shape = 'u32[]', space=smem, size = 0x4, offset = 0x4, fixed_abs, tag = 'smem constant byte address 0x4 - core index']
  #allocation1 [shape = 'u32[144,128]{1,0:T(1,128)}', space=vmem, size = 0x12000, scoped, tag = 'internal scratch']
  %s0 = inlined_call_operand.vmem [shape: f32[2,12,8,128], index: 0, kind: input, shape index: {}, may-alias: {0,1}]
  %s1 = inlined_call_operand.vmem [shape: f32[2,12,8,128], index: 1, kind: input, shape index: {}, may-alias: {0,1}]
  %s2 = inlined_call_operand.vmem [shape: bf16[256,128], index: 2, kind: input, shape index: {}]
  %s3 = inlined_call_operand.vmem [shape: f32[1,128], index: 3, kind: input, shape index: {}]
  %s4 = inlined_call_operand.vmem [shape: f32[8,8,128], index: 4, kind: output, shape index: {}]
  %s5 = sld [smem:[#allocation0]]
  $region26: #{trajpre_local_attn_long_forward.3} parent=0
    _
  %s7 = ssub.s32 1, %s5
  %s8 = scalar_select 0, %s7, %s5
  // Predicated region
  $region2: #{trajpre_local_attn_long_forward.3} parent=0 // pred_check
    _
  $region3: #{trajpre_local_attn_long_forward.3} parent=0 // pred_check_branch
    %10 = sbr.rel (0) target = $region5
  $region4: #{trajpre_local_attn_long_forward.3} parent=0 // pred_region
    %s11 = scalar_lea.vmem %s0, 96
  $region5: #{trajpre_local_attn_long_forward.3} parent=0 // pred_fallthru
    _
  // Predicated region
  $region6: #{trajpre_local_attn_long_forward.3} parent=0 // pred_check
    _
  $region7: #{trajpre_local_attn_long_forward.3} parent=0 // pred_check_branch
    %13 = sbr.rel (0) target = $region9
  $region8: #{trajpre_local_attn_long_forward.3} parent=0 // pred_region
    _
  $region9: #{trajpre_local_attn_long_forward.3} parent=0 // pred_fallthru
    _
  // Predicated region
  $region10: #{trajpre_local_attn_long_forward.3} parent=0 // pred_check
    _
  $region11: #{trajpre_local_attn_long_forward.3} parent=0 // pred_check_branch
    %15 = sbr.rel (0) target = $region13
  $region12: #{trajpre_local_attn_long_forward.3} parent=0 // pred_region
    _
  $region13: #{trajpre_local_attn_long_forward.3} parent=0 // pred_fallthru
    _
  // Predicated region
  $region14: #{trajpre_local_attn_long_forward.3} parent=0 // pred_check
    _
  $region15: #{trajpre_local_attn_long_forward.3} parent=0 // pred_check_branch
    %17 = sbr.rel (0) target = $region17
  $region16: #{trajpre_local_attn_long_forward.3} parent=0 // pred_region
    _
  $region17: #{trajpre_local_attn_long_forward.3} parent=0 // pred_fallthru
    _
  %s18 = scalar_lea.vmem %s0, 96
  %s19 = scalar_lea.vmem %s0, 96
  %v21 = vld [vmem:[%s19] sm:$0xff]
  %v22 = vld [vmem:[%s19 + $0x8] sm:$0xff]
  %v23 = vld [vmem:[%s19 + $0x10] sm:$0xff]
  %v24 = vld [vmem:[%s19 + $0x18] sm:$0xff]
  %v25 = vld [vmem:[%s19 + $0x20] sm:$0xff]
  %v26 = vld [vmem:[%s19 + $0x28] sm:$0xff]
  %v27 = vld [vmem:[%s19 + $0x30] sm:$0xff]
  %v28 = vld [vmem:[%s19 + $0x38] sm:$0xff]
  %v29 = vld [vmem:[%s1] sm:$0xff]
  %v30 = vld [vmem:[%s1 + $0x8] sm:$0xff]
  %v31 = vld [vmem:[%s1 + $0x10] sm:$0xff]
  %v32 = vld [vmem:[%s1 + $0x18] sm:$0xff]
  %v33 = vld [vmem:[%s1 + $0x20] sm:$0xff]
  %v34 = vld [vmem:[%s1 + $0x28] sm:$0xff]
  %v35 = vld [vmem:[%s1 + $0x30] sm:$0xff]
  %v36 = vld [vmem:[%s1 + $0x38] sm:$0xff]
  %v37 = vld [vmem:[%s1 + $0x40] sm:$0xff]
  %v38 = vld [vmem:[%s1 + $0x48] sm:$0xff]
  %v39 = vld [vmem:[%s1 + $0x50] sm:$0xff]
  %v40 = vld [vmem:[%s1 + $0x58] sm:$0xff]
  %v41 = vcombine.low %v21, %v23
  %v42 = vcombine.high %v21, %v23
  %v44 = vunpack.c.l.s4 1983009808
  %v45 = vunpack.c.0.s8 %v44
  %v46 = vlaneseq
  %v47 = vshrl.u32 %v46, 7
  %v48 = vsub.s32 %v45, %v47
  %v49 = vrot.slane %v41, %v48
  %v51 = vunpack.c.l.s4 1983009808
  %v52 = vunpack.c.0.s8 %v51
  %v53 = vlaneseq
  %v54 = vshrl.u32 %v53, 7
  %v55 = vsub.s32 %v52, %v54
  %v56 = vrot.slane %v42, %v55
  %v57 = vcombine.low %v22, %v24
  %v58 = vcombine.high %v22, %v24
  %v60 = vunpack.c.l.s4 1983009808
  %v61 = vunpack.c.0.s8 %v60
  %v62 = vlaneseq
  %v63 = vshrl.u32 %v62, 7
  %v64 = vsub.s32 %v61, %v63
  %v65 = vrot.slane %v57, %v64
  %v67 = vunpack.c.l.s4 1983009808
  %v68 = vunpack.c.0.s8 %v67
  %v69 = vlaneseq
  %v70 = vshrl.u32 %v69, 7
  %v71 = vsub.s32 %v68, %v70
  %v72 = vrot.slane %v58, %v71
  %v73 = vcombine.low %v25, %v27
  %v74 = vcombine.high %v25, %v27
  %v76 = vunpack.c.l.s4 1983009808
  %v77 = vunpack.c.0.s8 %v76
  %v78 = vlaneseq
  %v79 = vshrl.u32 %v78, 7
  %v80 = vsub.s32 %v77, %v79
  %v81 = vrot.slane %v73, %v80
  %v83 = vunpack.c.l.s4 1983009808
  %v84 = vunpack.c.0.s8 %v83
  %v85 = vlaneseq
  %v86 = vshrl.u32 %v85, 7
  %v87 = vsub.s32 %v84, %v86
  %v88 = vrot.slane %v74, %v87
  %v89 = vcombine.low %v26, %v28
  %v90 = vcombine.high %v26, %v28
  %v92 = vunpack.c.l.s4 1983009808
  %v93 = vunpack.c.0.s8 %v92
  %v94 = vlaneseq
  %v95 = vshrl.u32 %v94, 7
  %v96 = vsub.s32 %v93, %v95
  %v97 = vrot.slane %v89, %v96
  %v99 = vunpack.c.l.s4 1983009808
  %v100 = vunpack.c.0.s8 %v99
  %v101 = vlaneseq
  %v102 = vshrl.u32 %v101, 7
  %v103 = vsub.s32 %v100, %v102
  %v104 = vrot.slane %v90, %v103
  %v105 = vcombine.low %v49, %v65
  %v106 = vcombine.high %v49, %v65
  %v108 = vunpack.c.l.s4 1934713408
  %v109 = vunpack.c.0.s8 %v108
  %v110 = vlaneseq
  %v111 = vshrl.u32 %v110, 7
  %v112 = vsub.s32 %v109, %v111
  %v113 = vrot.slane %v105, %v112
  %v115 = vunpack.c.l.s4 1934713408
  %v116 = vunpack.c.0.s8 %v115
  %v117 = vlaneseq
  %v118 = vshrl.u32 %v117, 7
  %v119 = vsub.s32 %v116, %v118
  %v120 = vrot.slane %v106, %v119
  %v121 = vcombine.low %v56, %v72
  %v122 = vcombine.high %v56, %v72
  %v124 = vunpack.c.l.s4 1934713408
  %v125 = vunpack.c.0.s8 %v124
  %v126 = vlaneseq
  %v127 = vshrl.u32 %v126, 7
  %v128 = vsub.s32 %v125, %v127
  %v129 = vrot.slane %v121, %v128
  %v131 = vunpack.c.l.s4 1934713408
  %v132 = vunpack.c.0.s8 %v131
  %v133 = vlaneseq
  %v134 = vshrl.u32 %v133, 7
  %v135 = vsub.s32 %v132, %v134
  %v136 = vrot.slane %v122, %v135
  %v137 = vcombine.low %v81, %v97
  %v138 = vcombine.high %v81, %v97
  %v140 = vunpack.c.l.s4 1934713408
  %v141 = vunpack.c.0.s8 %v140
  %v142 = vlaneseq
  %v143 = vshrl.u32 %v142, 7
  %v144 = vsub.s32 %v141, %v143
  %v145 = vrot.slane %v137, %v144
  %v147 = vunpack.c.l.s4 1934713408
  %v148 = vunpack.c.0.s8 %v147
  %v149 = vlaneseq
  %v150 = vshrl.u32 %v149, 7
  %v151 = vsub.s32 %v148, %v150
  %v152 = vrot.slane %v138, %v151
  %v153 = vcombine.low %v88, %v104
  %v154 = vcombine.high %v88, %v104
  %v156 = vunpack.c.l.s4 1934713408
  %v157 = vunpack.c.0.s8 %v156
  %v158 = vlaneseq
  %v159 = vshrl.u32 %v158, 7
  %v160 = vsub.s32 %v157, %v159
  %v161 = vrot.slane %v153, %v160
  %v163 = vunpack.c.l.s4 1934713408
  %v164 = vunpack.c.0.s8 %v163
  %v165 = vlaneseq
  %v166 = vshrl.u32 %v165, 7
  %v167 = vsub.s32 %v164, %v166
  %v168 = vrot.slane %v154, %v167
  %v169 = vcombine.low %v113, %v145
  %v170 = vcombine.high %v113, %v145
  %v171 = vcombine.low %v120, %v152
  %v172 = vcombine.high %v120, %v152
  %v173 = vcombine.low %v129, %v161
  %v174 = vcombine.high %v129, %v161
  %v175 = vcombine.low %v136, %v168
  %v176 = vcombine.high %v136, %v168
  %v177 = vcombine.low %v29, %v31
  %v178 = vcombine.high %v29, %v31
  %v180 = vunpack.c.l.s4 1983009808
  %v181 = vunpack.c.0.s8 %v180
  %v182 = vlaneseq
  %v183 = vshrl.u32 %v182, 7
  %v184 = vsub.s32 %v181, %v183
  %v185 = vrot.slane %v177, %v184
  %v187 = vunpack.c.l.s4 1983009808
  %v188 = vunpack.c.0.s8 %v187
  %v189 = vlaneseq
  %v190 = vshrl.u32 %v189, 7
  %v191 = vsub.s32 %v188, %v190
  %v192 = vrot.slane %v178, %v191
  %v193 = vcombine.low %v30, %v32
  %v194 = vcombine.high %v30, %v32
  %v196 = vunpack.c.l.s4 1983009808
  %v197 = vunpack.c.0.s8 %v196
  %v198 = vlaneseq
  %v199 = vshrl.u32 %v198, 7
  %v200 = vsub.s32 %v197, %v199
  %v201 = vrot.slane %v193, %v200
  %v203 = vunpack.c.l.s4 1983009808
  %v204 = vunpack.c.0.s8 %v203
  %v205 = vlaneseq
  %v206 = vshrl.u32 %v205, 7
  %v207 = vsub.s32 %v204, %v206
  %v208 = vrot.slane %v194, %v207
  %v209 = vcombine.low %v33, %v35
  %v210 = vcombine.high %v33, %v35
  %v212 = vunpack.c.l.s4 1983009808
  %v213 = vunpack.c.0.s8 %v212
  %v214 = vlaneseq
  %v215 = vshrl.u32 %v214, 7
  %v216 = vsub.s32 %v213, %v215
  %v217 = vrot.slane %v209, %v216
  %v219 = vunpack.c.l.s4 1983009808
  %v220 = vunpack.c.0.s8 %v219
  %v221 = vlaneseq
  %v222 = vshrl.u32 %v221, 7
  %v223 = vsub.s32 %v220, %v222
  %v224 = vrot.slane %v210, %v223
  %v225 = vcombine.low %v34, %v36
  %v226 = vcombine.high %v34, %v36
  %v228 = vunpack.c.l.s4 1983009808
  %v229 = vunpack.c.0.s8 %v228
  %v230 = vlaneseq
  %v231 = vshrl.u32 %v230, 7
  %v232 = vsub.s32 %v229, %v231
  %v233 = vrot.slane %v225, %v232
  %v235 = vunpack.c.l.s4 1983009808
  %v236 = vunpack.c.0.s8 %v235
  %v237 = vlaneseq
  %v238 = vshrl.u32 %v237, 7
  %v239 = vsub.s32 %v236, %v238
  %v240 = vrot.slane %v226, %v239
  %v241 = vcombine.low %v185, %v201
  %v242 = vcombine.high %v185, %v201
  %v244 = vunpack.c.l.s4 1934713408
  %v245 = vunpack.c.0.s8 %v244
  %v246 = vlaneseq
  %v247 = vshrl.u32 %v246, 7
  %v248 = vsub.s32 %v245, %v247
  %v249 = vrot.slane %v241, %v248
  %v251 = vunpack.c.l.s4 1934713408
  %v252 = vunpack.c.0.s8 %v251
  %v253 = vlaneseq
  %v254 = vshrl.u32 %v253, 7
  %v255 = vsub.s32 %v252, %v254
  %v256 = vrot.slane %v242, %v255
  %v257 = vcombine.low %v192, %v208
  %v258 = vcombine.high %v192, %v208
  %v260 = vunpack.c.l.s4 1934713408
  %v261 = vunpack.c.0.s8 %v260
  %v262 = vlaneseq
  %v263 = vshrl.u32 %v262, 7
  %v264 = vsub.s32 %v261, %v263
  %v265 = vrot.slane %v257, %v264
  %v267 = vunpack.c.l.s4 1934713408
  %v268 = vunpack.c.0.s8 %v267
  %v269 = vlaneseq
  %v270 = vshrl.u32 %v269, 7
  %v271 = vsub.s32 %v268, %v270
  %v272 = vrot.slane %v258, %v271
  %v273 = vcombine.low %v217, %v233
  %v274 = vcombine.high %v217, %v233
  %v276 = vunpack.c.l.s4 1934713408
  %v277 = vunpack.c.0.s8 %v276
  %v278 = vlaneseq
  %v279 = vshrl.u32 %v278, 7
  %v280 = vsub.s32 %v277, %v279
  %v281 = vrot.slane %v273, %v280
  %v283 = vunpack.c.l.s4 1934713408
  %v284 = vunpack.c.0.s8 %v283
  %v285 = vlaneseq
  %v286 = vshrl.u32 %v285, 7
  %v287 = vsub.s32 %v284, %v286
  %v288 = vrot.slane %v274, %v287
  %v289 = vcombine.low %v224, %v240
  %v290 = vcombine.high %v224, %v240
  %v292 = vunpack.c.l.s4 1934713408
  %v293 = vunpack.c.0.s8 %v292
  %v294 = vlaneseq
  %v295 = vshrl.u32 %v294, 7
  %v296 = vsub.s32 %v293, %v295
  %v297 = vrot.slane %v289, %v296
  %v299 = vunpack.c.l.s4 1934713408
  %v300 = vunpack.c.0.s8 %v299
  %v301 = vlaneseq
  %v302 = vshrl.u32 %v301, 7
  %v303 = vsub.s32 %v300, %v302
  %v304 = vrot.slane %v290, %v303
  %v305 = vcombine.low %v249, %v281
  %v306 = vcombine.high %v249, %v281
  %v307 = vcombine.low %v256, %v288
  %v308 = vcombine.high %v256, %v288
  %v309 = vcombine.low %v265, %v297
  %v310 = vcombine.high %v265, %v297
  %v311 = vcombine.low %v272, %v304
  %v312 = vcombine.high %v272, %v304
  %v313 = vcombine.low %v37, %v39
  %v314 = vcombine.high %v37, %v39
  %v316 = vunpack.c.l.s4 1983009808
  %v317 = vunpack.c.0.s8 %v316
  %v318 = vlaneseq
  %v319 = vshrl.u32 %v318, 7
  %v320 = vsub.s32 %v317, %v319
  %v321 = vrot.slane %v313, %v320
  %v323 = vunpack.c.l.s4 1983009808
  %v324 = vunpack.c.0.s8 %v323
  %v325 = vlaneseq
  %v326 = vshrl.u32 %v325, 7
  %v327 = vsub.s32 %v324, %v326
  %v328 = vrot.slane %v314, %v327
  %v329 = vcombine.low %v38, %v40
  %v330 = vcombine.high %v38, %v40
  %v332 = vunpack.c.l.s4 1983009808
  %v333 = vunpack.c.0.s8 %v332
  %v334 = vlaneseq
  %v335 = vshrl.u32 %v334, 7
  %v336 = vsub.s32 %v333, %v335
  %v337 = vrot.slane %v329, %v336
  %v339 = vunpack.c.l.s4 1983009808
  %v340 = vunpack.c.0.s8 %v339
  %v341 = vlaneseq
  %v342 = vshrl.u32 %v341, 7
  %v343 = vsub.s32 %v340, %v342
  %v344 = vrot.slane %v330, %v343
  %v345 = vcombine.low %v321, %v337
  %v346 = vcombine.high %v321, %v337
  %v348 = vunpack.c.l.s4 1934713408
  %v349 = vunpack.c.0.s8 %v348
  %v350 = vlaneseq
  %v351 = vshrl.u32 %v350, 7
  %v352 = vsub.s32 %v349, %v351
  %v353 = vrot.slane %v345, %v352
  %v355 = vunpack.c.l.s4 1934713408
  %v356 = vunpack.c.0.s8 %v355
  %v357 = vlaneseq
  %v358 = vshrl.u32 %v357, 7
  %v359 = vsub.s32 %v356, %v358
  %v360 = vrot.slane %v346, %v359
  %v361 = vcombine.low %v328, %v344
  %v362 = vcombine.high %v328, %v344
  %v364 = vunpack.c.l.s4 1934713408
  %v365 = vunpack.c.0.s8 %v364
  %v366 = vlaneseq
  %v367 = vshrl.u32 %v366, 7
  %v368 = vsub.s32 %v365, %v367
  %v369 = vrot.slane %v361, %v368
  %v371 = vunpack.c.l.s4 1934713408
  %v372 = vunpack.c.0.s8 %v371
  %v373 = vlaneseq
  %v374 = vshrl.u32 %v373, 7
  %v375 = vsub.s32 %v372, %v374
  %v376 = vrot.slane %v362, %v375
  %v377 = vcombine.high %v353, 0.0
  %v378 = vcombine.high %v360, 0.0
  %v379 = vcombine.high %v369, 0.0
  %v380 = vcombine.high %v376, 0.0
  %v381 = vpack.c.bf16 %v169, %v169
  %v382 = vpack.c.bf16 %v170, %v170
  %v383 = vpack.c.bf16 %v171, %v171
  %v384 = vpack.c.bf16 %v172, %v172
  %v385 = vpack.c.bf16 %v173, %v173
  %v386 = vpack.c.bf16 %v174, %v174
  %v387 = vpack.c.bf16 %v175, %v175
  %v388 = vpack.c.bf16 %v176, %v176
  %v389 = vpack.c.bf16 %v353, %v305
  %v390 = vpack.c.bf16 %v377, %v306
  %v391 = vpack.c.bf16 %v360, %v307
  %v392 = vpack.c.bf16 %v378, %v308
  %v393 = vpack.c.bf16 %v369, %v309
  %v394 = vpack.c.bf16 %v379, %v310
  %v395 = vpack.c.bf16 %v376, %v311
  %v396 = vpack.c.bf16 %v380, %v312
  %397 = vmatprep.subr.bf16.mxu0 0
  %398 = vmatpush1.bf16.xpose.msra.mxu0 %v389
  %399 = vmatprep.subr.bf16.mxu0 0
  %400 = vmatpush1.bf16.xpose.msra.mxu0 0
  %401 = vmatprep.subr.bf16.mxu0 0
  %402 = vmatpush1.bf16.xpose.msra.mxu0 0
  %403 = vmatprep.subr.bf16.mxu0 0
  %404 = vmatpush1.bf16.xpose.msra.mxu0 0
  %405 = vmatprep.subr.bf16.mxu0 0
  %406 = vmatpush1.bf16.xpose.msra.mxu0 0
  %407 = vmatprep.subr.bf16.mxu0 0
  %408 = vmatpush1.bf16.xpose.msra.mxu0 0
  %409 = vmatprep.subr.bf16.mxu0 0
  %410 = vmatpush1.bf16.xpose.msra.mxu0 0
  %411 = vmatprep.subr.bf16.mxu0 0
  %412 = vmatpush1.bf16.xpose.msra.mxu0 0
  %413 = vmatprep.subr.bf16.mxu0 0
  %414 = vmatpush1.bf16.xpose.msra.mxu0 0
  %415 = vmatprep.subr.bf16.mxu0 0
  %416 = vmatpush1.bf16.xpose.msra.mxu0 0
  %417 = vmatprep.subr.bf16.mxu0 0
  %418 = vmatpush1.bf16.xpose.msra.mxu0 0
  %419 = vmatprep.subr.bf16.mxu0 0
  %420 = vmatpush1.bf16.xpose.msra.mxu0 0
  %421 = vmatprep.subr.bf16.mxu0 0
  %422 = vmatpush1.bf16.xpose.msra.mxu0 0
  %423 = vmatprep.subr.bf16.mxu0 0
  %424 = vmatpush1.bf16.xpose.msra.mxu0 0
  %425 = vmatprep.subr.bf16.mxu0 0
  %426 = vmatpush1.bf16.xpose.msra.mxu0 0
  %427 = vmatprep.subr.bf16.mxu0 0
  %428 = vmatpush1.bf16.xpose.msra.mxu0 0
  %429 = vmatprep.mubr.bf16.mxu0 0
  %430 = vmatmul.mubr.bf16.gmra.mrb[0].mxu0 %v381
  %v431 = vpop.f32.mrb[0].mxu0
  %v432 = vadd.f32 0.0, %v431
  %v433 = vpop.f32.mrb[0].mxu0
  %v434 = vpop.f32.mrb[0].mxu0
  %v435 = vpop.f32.mrb[0].mxu0
  %436 = vdwg.mxu0
  %437 = vmatprep.subr.bf16.mxu0 0
  %438 = vmatpush1.bf16.xpose.msra.mxu0 %v390
  %439 = vmatprep.subr.bf16.mxu0 0
  %440 = vmatpush1.bf16.xpose.msra.mxu0 0
  %441 = vmatprep.subr.bf16.mxu0 0
  %442 = vmatpush1.bf16.xpose.msra.mxu0 0
  %443 = vmatprep.subr.bf16.mxu0 0
  %444 = vmatpush1.bf16.xpose.msra.mxu0 0
  %445 = vmatprep.subr.bf16.mxu0 0
  %446 = vmatpush1.bf16.xpose.msra.mxu0 0
  %447 = vmatprep.subr.bf16.mxu0 0
  %448 = vmatpush1.bf16.xpose.msra.mxu0 0
  %449 = vmatprep.subr.bf16.mxu0 0
  %450 = vmatpush1.bf16.xpose.msra.mxu0 0
  %451 = vmatprep.subr.bf16.mxu0 0
  %452 = vmatpush1.bf16.xpose.msra.mxu0 0
  %453 = vmatprep.subr.bf16.mxu0 0
  %454 = vmatpush1.bf16.xpose.msra.mxu0 0
  %455 = vmatprep.subr.bf16.mxu0 0
  %456 = vmatpush1.bf16.xpose.msra.mxu0 0
  %457 = vmatprep.subr.bf16.mxu0 0
  %458 = vmatpush1.bf16.xpose.msra.mxu0 0
  %459 = vmatprep.subr.bf16.mxu0 0
  %460 = vmatpush1.bf16.xpose.msra.mxu0 0
  %461 = vmatprep.subr.bf16.mxu0 0
  %462 = vmatpush1.bf16.xpose.msra.mxu0 0
  %463 = vmatprep.subr.bf16.mxu0 0
  %464 = vmatpush1.bf16.xpose.msra.mxu0 0
  %465 = vmatprep.subr.bf16.mxu0 0
  %466 = vmatpush1.bf16.xpose.msra.mxu0 0
  %467 = vmatprep.subr.bf16.mxu0 0
  %468 = vmatpush1.bf16.xpose.msra.mxu0 0
  %469 = vmatprep.mubr.bf16.mxu0 0
  %470 = vmatmul.mubr.bf16.gmra.mrb[0].mxu0 %v382
  %v471 = vpop.f32.mrb[0].mxu0
  %v472 = vadd.f32 0.0, %v471
  %v473 = vpop.f32.mrb[0].mxu0
  %v474 = vpop.f32.mrb[0].mxu0
  %v475 = vpop.f32.mrb[0].mxu0
  %476 = vdwg.mxu0
  %477 = vmatprep.subr.bf16.mxu0 0
  %478 = vmatpush1.bf16.xpose.msra.mxu0 %v391
  %479 = vmatprep.subr.bf16.mxu0 0
  %480 = vmatpush1.bf16.xpose.msra.mxu0 0
  %481 = vmatprep.subr.bf16.mxu0 0
  %482 = vmatpush1.bf16.xpose.msra.mxu0 0
  %483 = vmatprep.subr.bf16.mxu0 0
  %484 = vmatpush1.bf16.xpose.msra.mxu0 0
  %485 = vmatprep.subr.bf16.mxu0 0
  %486 = vmatpush1.bf16.xpose.msra.mxu0 0
  %487 = vmatprep.subr.bf16.mxu0 0
  %488 = vmatpush1.bf16.xpose.msra.mxu0 0
  %489 = vmatprep.subr.bf16.mxu0 0
  %490 = vmatpush1.bf16.xpose.msra.mxu0 0
  %491 = vmatprep.subr.bf16.mxu0 0
  %492 = vmatpush1.bf16.xpose.msra.mxu0 0
  %493 = vmatprep.subr.bf16.mxu0 0
  %494 = vmatpush1.bf16.xpose.msra.mxu0 0
  %495 = vmatprep.subr.bf16.mxu0 0
  %496 = vmatpush1.bf16.xpose.msra.mxu0 0
  %497 = vmatprep.subr.bf16.mxu0 0
  %498 = vmatpush1.bf16.xpose.msra.mxu0 0
  %499 = vmatprep.subr.bf16.mxu0 0
  %500 = vmatpush1.bf16.xpose.msra.mxu0 0
  %501 = vmatprep.subr.bf16.mxu0 0
  %502 = vmatpush1.bf16.xpose.msra.mxu0 0
  %503 = vmatprep.subr.bf16.mxu0 0
  %504 = vmatpush1.bf16.xpose.msra.mxu0 0
  %505 = vmatprep.subr.bf16.mxu0 0
  %506 = vmatpush1.bf16.xpose.msra.mxu0 0
  %507 = vmatprep.subr.bf16.mxu0 0
  %508 = vmatpush1.bf16.xpose.msra.mxu0 0
  %509 = vmatprep.mubr.bf16.mxu0 0
  %510 = vmatmul.mubr.bf16.gmra.mrb[0].mxu0 %v383
  %v511 = vpop.f32.mrb[0].mxu0
  %v512 = vadd.f32 0.0, %v511
  %v513 = vpop.f32.mrb[0].mxu0
  %v514 = vpop.f32.mrb[0].mxu0
  %v515 = vpop.f32.mrb[0].mxu0
  %516 = vdwg.mxu0
  %517 = vmatprep.subr.bf16.mxu0 0
  %518 = vmatpush1.bf16.xpose.msra.mxu0 %v392
  %519 = vmatprep.subr.bf16.mxu0 0
  %520 = vmatpush1.bf16.xpose.msra.mxu0 0
  %521 = vmatprep.subr.bf16.mxu0 0
  %522 = vmatpush1.bf16.xpose.msra.mxu0 0
  %523 = vmatprep.subr.bf16.mxu0 0
  %524 = vmatpush1.bf16.xpose.msra.mxu0 0
  %525 = vmatprep.subr.bf16.mxu0 0
  %526 = vmatpush1.bf16.xpose.msra.mxu0 0
  %527 = vmatprep.subr.bf16.mxu0 0
  %528 = vmatpush1.bf16.xpose.msra.mxu0 0
  %529 = vmatprep.subr.bf16.mxu0 0
  %530 = vmatpush1.bf16.xpose.msra.mxu0 0
  %531 = vmatprep.subr.bf16.mxu0 0
  %532 = vmatpush1.bf16.xpose.msra.mxu0 0
  %533 = vmatprep.subr.bf16.mxu0 0
  %534 = vmatpush1.bf16.xpose.msra.mxu0 0
  %535 = vmatprep.subr.bf16.mxu0 0
  %536 = vmatpush1.bf16.xpose.msra.mxu0 0
  %537 = vmatprep.subr.bf16.mxu0 0
  %538 = vmatpush1.bf16.xpose.msra.mxu0 0
  %539 = vmatprep.subr.bf16.mxu0 0
  %540 = vmatpush1.bf16.xpose.msra.mxu0 0
  %541 = vmatprep.subr.bf16.mxu0 0
  %542 = vmatpush1.bf16.xpose.msra.mxu0 0
  %543 = vmatprep.subr.bf16.mxu0 0
  %544 = vmatpush1.bf16.xpose.msra.mxu0 0
  %545 = vmatprep.subr.bf16.mxu0 0
  %546 = vmatpush1.bf16.xpose.msra.mxu0 0
  %547 = vmatprep.subr.bf16.mxu0 0
  %548 = vmatpush1.bf16.xpose.msra.mxu0 0
  %549 = vmatprep.mubr.bf16.mxu0 0
  %550 = vmatmul.mubr.bf16.gmra.mrb[0].mxu0 %v384
  %v551 = vpop.f32.mrb[0].mxu0
  %v552 = vadd.f32 0.0, %v551
  %v553 = vpop.f32.mrb[0].mxu0
  %v554 = vpop.f32.mrb[0].mxu0
  %v555 = vpop.f32.mrb[0].mxu0
  %556 = vdwg.mxu0
  %557 = vmatprep.subr.bf16.mxu0 0
  %558 = vmatpush1.bf16.xpose.msra.mxu0 %v393
  %559 = vmatprep.subr.bf16.mxu0 0
  %560 = vmatpush1.bf16.xpose.msra.mxu0 0
  %561 = vmatprep.subr.bf16.mxu0 0
  %562 = vmatpush1.bf16.xpose.msra.mxu0 0
  %563 = vmatprep.subr.bf16.mxu0 0
  %564 = vmatpush1.bf16.xpose.msra.mxu0 0
  %565 = vmatprep.subr.bf16.mxu0 0
  %566 = vmatpush1.bf16.xpose.msra.mxu0 0
  %567 = vmatprep.subr.bf16.mxu0 0
  %568 = vmatpush1.bf16.xpose.msra.mxu0 0
  %569 = vmatprep.subr.bf16.mxu0 0
  %570 = vmatpush1.bf16.xpose.msra.mxu0 0
  %571 = vmatprep.subr.bf16.mxu0 0
  %572 = vmatpush1.bf16.xpose.msra.mxu0 0
  %573 = vmatprep.subr.bf16.mxu0 0
  %574 = vmatpush1.bf16.xpose.msra.mxu0 0
  %575 = vmatprep.subr.bf16.mxu0 0
  %576 = vmatpush1.bf16.xpose.msra.mxu0 0
  %577 = vmatprep.subr.bf16.mxu0 0
  %578 = vmatpush1.bf16.xpose.msra.mxu0 0
  %579 = vmatprep.subr.bf16.mxu0 0
  %580 = vmatpush1.bf16.xpose.msra.mxu0 0
  %581 = vmatprep.subr.bf16.mxu0 0
  %582 = vmatpush1.bf16.xpose.msra.mxu0 0
  %583 = vmatprep.subr.bf16.mxu0 0
  %584 = vmatpush1.bf16.xpose.msra.mxu0 0
  %585 = vmatprep.subr.bf16.mxu0 0
  %586 = vmatpush1.bf16.xpose.msra.mxu0 0
  %587 = vmatprep.subr.bf16.mxu0 0
  %588 = vmatpush1.bf16.xpose.msra.mxu0 0
  %589 = vmatprep.mubr.bf16.mxu0 0
  %590 = vmatmul.mubr.bf16.gmra.mrb[0].mxu0 %v385
  %v591 = vpop.f32.mrb[0].mxu0
  %v592 = vadd.f32 0.0, %v591
  %v593 = vpop.f32.mrb[0].mxu0
  %v594 = vpop.f32.mrb[0].mxu0
  %v595 = vpop.f32.mrb[0].mxu0
  %596 = vdwg.mxu0
  %597 = vmatprep.subr.bf16.mxu0 0
  %598 = vmatpush1.bf16.xpose.msra.mxu0 %v394
  %599 = vmatprep.subr.bf16.mxu0 0
  %600 = vmatpush1.bf16.xpose.msra.mxu0 0
  %601 = vmatprep.subr.bf16.mxu0 0
  %602 = vmatpush1.bf16.xpose.msra.mxu0 0
  %603 = vmatprep.subr.bf16.mxu0 0
  %604 = vmatpush1.bf16.xpose.msra.mxu0 0
  %605 = vmatprep.subr.bf16.mxu0 0
  %606 = vmatpush1.bf16.xpose.msra.mxu0 0
  %607 = vmatprep.subr.bf16.mxu0 0
  %608 = vmatpush1.bf16.xpose.msra.mxu0 0
  %609 = vmatprep.subr.bf16.mxu0 0
  %610 = vmatpush1.bf16.xpose.msra.mxu0 0
  %611 = vmatprep.subr.bf16.mxu0 0
  %612 = vmatpush1.bf16.xpose.msra.mxu0 0
  %613 = vmatprep.subr.bf16.mxu0 0
  %614 = vmatpush1.bf16.xpose.msra.mxu0 0
  %615 = vmatprep.subr.bf16.mxu0 0
  %616 = vmatpush1.bf16.xpose.msra.mxu0 0
  %617 = vmatprep.subr.bf16.mxu0 0
  %618 = vmatpush1.bf16.xpose.msra.mxu0 0
  %619 = vmatprep.subr.bf16.mxu0 0
  %620 = vmatpush1.bf16.xpose.msra.mxu0 0
  %621 = vmatprep.subr.bf16.mxu0 0
  %622 = vmatpush1.bf16.xpose.msra.mxu0 0
  %623 = vmatprep.subr.bf16.mxu0 0
  %624 = vmatpush1.bf16.xpose.msra.mxu0 0
  %625 = vmatprep.subr.bf16.mxu0 0
  %626 = vmatpush1.bf16.xpose.msra.mxu0 0
  %627 = vmatprep.subr.bf16.mxu0 0
  %628 = vmatpush1.bf16.xpose.msra.mxu0 0
  %629 = vmatprep.mubr.bf16.mxu0 0
  %630 = vmatmul.mubr.bf16.gmra.mrb[0].mxu0 %v386
  %v631 = vpop.f32.mrb[0].mxu0
  %v632 = vadd.f32 0.0, %v631
  %v633 = vpop.f32.mrb[0].mxu0
  %v634 = vpop.f32.mrb[0].mxu0
  %v635 = vpop.f32.mrb[0].mxu0
  %636 = vdwg.mxu0
  %637 = vmatprep.subr.bf16.mxu0 0
  %638 = vmatpush1.bf16.xpose.msra.mxu0 %v395
  %639 = vmatprep.subr.bf16.mxu0 0
  %640 = vmatpush1.bf16.xpose.msra.mxu0 0
  %641 = vmatprep.subr.bf16.mxu0 0
  %642 = vmatpush1.bf16.xpose.msra.mxu0 0
  %643 = vmatprep.subr.bf16.mxu0 0
  %644 = vmatpush1.bf16.xpose.msra.mxu0 0
  %645 = vmatprep.subr.bf16.mxu0 0
  %646 = vmatpush1.bf16.xpose.msra.mxu0 0
  %647 = vmatprep.subr.bf16.mxu0 0
  %648 = vmatpush1.bf16.xpose.msra.mxu0 0
  %649 = vmatprep.subr.bf16.mxu0 0
  %650 = vmatpush1.bf16.xpose.msra.mxu0 0
  %651 = vmatprep.subr.bf16.mxu0 0
  %652 = vmatpush1.bf16.xpose.msra.mxu0 0
  %653 = vmatprep.subr.bf16.mxu0 0
  %654 = vmatpush1.bf16.xpose.msra.mxu0 0
  %655 = vmatprep.subr.bf16.mxu0 0
  %656 = vmatpush1.bf16.xpose.msra.mxu0 0
  %657 = vmatprep.subr.bf16.mxu0 0
  %658 = vmatpush1.bf16.xpose.msra.mxu0 0
  %659 = vmatprep.subr.bf16.mxu0 0
  %660 = vmatpush1.bf16.xpose.msra.mxu0 0
  %661 = vmatprep.subr.bf16.mxu0 0
  %662 = vmatpush1.bf16.xpose.msra.mxu0 0
  %663 = vmatprep.subr.bf16.mxu0 0
  %664 = vmatpush1.bf16.xpose.msra.mxu0 0
  %665 = vmatprep.subr.bf16.mxu0 0
  %666 = vmatpush1.bf16.xpose.msra.mxu0 0
  %667 = vmatprep.subr.bf16.mxu0 0
  %668 = vmatpush1.bf16.xpose.msra.mxu0 0
  %669 = vmatprep.mubr.bf16.mxu0 0
  %670 = vmatmul.mubr.bf16.gmra.mrb[0].mxu0 %v387
  %v671 = vpop.f32.mrb[0].mxu0
  %v672 = vadd.f32 0.0, %v671
  %v673 = vpop.f32.mrb[0].mxu0
  %v674 = vpop.f32.mrb[0].mxu0
  %v675 = vpop.f32.mrb[0].mxu0
  %676 = vdwg.mxu0
  %677 = vmatprep.subr.bf16.mxu0 0
  %678 = vmatpush1.bf16.xpose.msra.mxu0 %v396
  %679 = vmatprep.subr.bf16.mxu0 0
  %680 = vmatpush1.bf16.xpose.msra.mxu0 0
  %681 = vmatprep.subr.bf16.mxu0 0
  %682 = vmatpush1.bf16.xpose.msra.mxu0 0
  %683 = vmatprep.subr.bf16.mxu0 0
  %684 = vmatpush1.bf16.xpose.msra.mxu0 0
  %685 = vmatprep.subr.bf16.mxu0 0
  %686 = vmatpush1.bf16.xpose.msra.mxu0 0
  %687 = vmatprep.subr.bf16.mxu0 0
  %688 = vmatpush1.bf16.xpose.msra.mxu0 0
  %689 = vmatprep.subr.bf16.mxu0 0
  %690 = vmatpush1.bf16.xpose.msra.mxu0 0
  %691 = vmatprep.subr.bf16.mxu0 0
  %692 = vmatpush1.bf16.xpose.msra.mxu0 0
  %693 = vmatprep.subr.bf16.mxu0 0
  %694 = vmatpush1.bf16.xpose.msra.mxu0 0
  %695 = vmatprep.subr.bf16.mxu0 0
  %696 = vmatpush1.bf16.xpose.msra.mxu0 0
  %697 = vmatprep.subr.bf16.mxu0 0
  %698 = vmatpush1.bf16.xpose.msra.mxu0 0
  %699 = vmatprep.subr.bf16.mxu0 0
  %700 = vmatpush1.bf16.xpose.msra.mxu0 0
  %701 = vmatprep.subr.bf16.mxu0 0
  %702 = vmatpush1.bf16.xpose.msra.mxu0 0
  %703 = vmatprep.subr.bf16.mxu0 0
  %704 = vmatpush1.bf16.xpose.msra.mxu0 0
  %705 = vmatprep.subr.bf16.mxu0 0
  %706 = vmatpush1.bf16.xpose.msra.mxu0 0
  %707 = vmatprep.subr.bf16.mxu0 0
  %708 = vmatpush1.bf16.xpose.msra.mxu0 0
  %709 = vmatprep.mubr.bf16.mxu0 0
  %710 = vmatmul.mubr.bf16.gmra.mrb[0].mxu0 %v388
  %v711 = vpop.f32.mrb[0].mxu0
  %v712 = vadd.f32 0.0, %v711
  %v713 = vpop.f32.mrb[0].mxu0
  %v714 = vpop.f32.mrb[0].mxu0
  %v715 = vpop.f32.mrb[0].mxu0
  %716 = vdwg.mxu0
  %vm717 = vcmask 97280
  %v718 = vsel %vm717, %v432, -inf
  %719 = vmax.xlane.f32.xlu0 %v718
  %v720 = vpop.xlane.xlu0 %719
  %v721 = vsel %vm717, %v472, -inf
  %722 = vmax.xlane.f32.xlu0 %v721
  %v723 = vpop.xlane.xlu0 %722
  %v724 = vsel %vm717, %v512, -inf
  %725 = vmax.xlane.f32.xlu0 %v724
  %v726 = vpop.xlane.xlu0 %725
  %v727 = vsel %vm717, %v552, -inf
  %728 = vmax.xlane.f32.xlu0 %v727
  %v729 = vpop.xlane.xlu0 %728
  %v730 = vsel %vm717, %v592, -inf
  %731 = vmax.xlane.f32.xlu0 %v730
  %v732 = vpop.xlane.xlu0 %731
  %v733 = vsel %vm717, %v632, -inf
  %734 = vmax.xlane.f32.xlu0 %v733
  %v735 = vpop.xlane.xlu0 %734
  %v736 = vsel %vm717, %v672, -inf
  %737 = vmax.xlane.f32.xlu0 %v736
  %v738 = vpop.xlane.xlu0 %737
  %v739 = vsel %vm717, %v712, -inf
  %740 = vmax.xlane.f32.xlu0 %v739
  %v741 = vpop.xlane.xlu0 %740
  %v742 = vsub.f32 %v432, %v720
  %v743 = vsub.f32 %v472, %v723
  %v744 = vsub.f32 %v512, %v726
  %v745 = vsub.f32 %v552, %v729
  %v746 = vsub.f32 %v592, %v732
  %v747 = vsub.f32 %v632, %v735
  %v748 = vsub.f32 %v672, %v738
  %v749 = vsub.f32 %v712, %v741
  %v750 = vmul.f32 %v742, 1.442695
  %v751 = vpow.pop %v750
  %v752 = vmul.f32 %v743, 1.442695
  %v753 = vpow.pop %v752
  %v754 = vmul.f32 %v744, 1.442695
  %v755 = vpow.pop %v754
  %v756 = vmul.f32 %v745, 1.442695
  %v757 = vpow.pop %v756
  %v758 = vmul.f32 %v746, 1.442695
  %v759 = vpow.pop %v758
  %v760 = vmul.f32 %v747, 1.442695
  %v761 = vpow.pop %v760
  %v762 = vmul.f32 %v748, 1.442695
  %v763 = vpow.pop %v762
  %v764 = vmul.f32 %v749, 1.442695
  %v765 = vpow.pop %v764
  %v766 = vsel %vm717, %v751, 0.0
  %767 = vadd.xlane.f32.xlu0 %v766
  %v768 = vpop.xlane.xlu0 %767
  %v769 = vsel %vm717, %v753, 0.0
  %770 = vadd.xlane.f32.xlu0 %v769
  %v771 = vpop.xlane.xlu0 %770
  %v772 = vsel %vm717, %v755, 0.0
  %773 = vadd.xlane.f32.xlu0 %v772
  %v774 = vpop.xlane.xlu0 %773
  %v775 = vsel %vm717, %v757, 0.0
  %776 = vadd.xlane.f32.xlu0 %v775
  %v777 = vpop.xlane.xlu0 %776
  %v778 = vsel %vm717, %v759, 0.0
  %779 = vadd.xlane.f32.xlu0 %v778
  %v780 = vpop.xlane.xlu0 %779
  %v781 = vsel %vm717, %v761, 0.0
  %782 = vadd.xlane.f32.xlu0 %v781
  %v783 = vpop.xlane.xlu0 %782
  %v784 = vsel %vm717, %v763, 0.0
  %785 = vadd.xlane.f32.xlu0 %v784
  %v786 = vpop.xlane.xlu0 %785
  %v787 = vsel %vm717, %v765, 0.0
  %788 = vadd.xlane.f32.xlu0 %v787
  %v789 = vpop.xlane.xlu0 %788
  %v790 = vrcp.pop %v768
  %v791 = vmul.f32 %v751, %v790
  %v792 = vrcp.pop %v771
  %v793 = vmul.f32 %v753, %v792
  %v794 = vrcp.pop %v774
  %v795 = vmul.f32 %v755, %v794
  %v796 = vrcp.pop %v777
  %v797 = vmul.f32 %v757, %v796
  %v798 = vrcp.pop %v780
  %v799 = vmul.f32 %v759, %v798
  %v800 = vrcp.pop %v783
  %v801 = vmul.f32 %v761, %v800
  %v802 = vrcp.pop %v786
  %v803 = vmul.f32 %v763, %v802
  %v804 = vrcp.pop %v789
  %v805 = vmul.f32 %v765, %v804
  %v806 = vpack.c.bf16 %v791, %v791
  %v807 = vpack.c.bf16 %v793, %v793
  %v808 = vpack.c.bf16 %v795, %v795
  %v809 = vpack.c.bf16 %v797, %v797
  %v810 = vpack.c.bf16 %v799, %v799
  %v811 = vpack.c.bf16 %v801, %v801
  %v812 = vpack.c.bf16 %v803, %v803
  %v813 = vpack.c.bf16 %v805, %v805
  %v815 = vsel %vm717, %v806, 0
  %vm817 = vcmask 1045504
  %v819 = vsel %vm817, %v389, 0
  %821 = vmatprep.subr.bf16.mxu0 0
  %822 = vmatpush1.bf16.msra.mxu0 %v819
  %823 = vmatprep.subr.bf16.mxu0 0
  %824 = vmatpush1.bf16.msra.mxu0 0
  %825 = vmatprep.subr.bf16.mxu0 0
  %826 = vmatpush1.bf16.msra.mxu0 0
  %827 = vmatprep.subr.bf16.mxu0 0
  %828 = vmatpush1.bf16.msra.mxu0 0
  %829 = vmatprep.subr.bf16.mxu0 0
  %830 = vmatpush1.bf16.msra.mxu0 0
  %831 = vmatprep.subr.bf16.mxu0 0
  %832 = vmatpush1.bf16.msra.mxu0 0
  %833 = vmatprep.subr.bf16.mxu0 0
  %834 = vmatpush1.bf16.msra.mxu0 0
  %835 = vmatprep.subr.bf16.mxu0 0
  %836 = vmatpush1.bf16.msra.mxu0 0
  %837 = vmatprep.subr.bf16.mxu0 0
  %838 = vmatpush1.bf16.msra.mxu0 0
  %839 = vmatprep.subr.bf16.mxu0 0
  %840 = vmatpush1.bf16.msra.mxu0 0
  %841 = vmatprep.subr.bf16.mxu0 0
  %842 = vmatpush1.bf16.msra.mxu0 0
  %843 = vmatprep.subr.bf16.mxu0 0
  %844 = vmatpush1.bf16.msra.mxu0 0
  %845 = vmatprep.subr.bf16.mxu0 0
  %846 = vmatpush1.bf16.msra.mxu0 0
  %847 = vmatprep.subr.bf16.mxu0 0
  %848 = vmatpush1.bf16.msra.mxu0 0
  %849 = vmatprep.subr.bf16.mxu0 0
  %850 = vmatpush1.bf16.msra.mxu0 0
  %851 = vmatprep.subr.bf16.mxu0 0
  %852 = vmatpush1.bf16.msra.mxu0 0
  %853 = vmatprep.mubr.bf16.mxu0 0
  %854 = vmatmul.mubr.bf16.gmra.mrb[0].mxu0 %v815
  %v855 = vpop.f32.mrb[0].mxu0
  %v856 = vadd.f32 0.0, %v855
  %v857 = vpop.f32.mrb[0].mxu0
  %v858 = vpop.f32.mrb[0].mxu0
  %v859 = vpop.f32.mrb[0].mxu0
  %860 = vdwg.mxu0
  %v862 = vsel %vm717, %v807, 0
  %v865 = vsel %vm817, %v390, 0
  %867 = vmatprep.subr.bf16.mxu0 0
  %868 = vmatpush1.bf16.msra.mxu0 %v865
  %869 = vmatprep.subr.bf16.mxu0 0
  %870 = vmatpush1.bf16.msra.mxu0 0
  %871 = vmatprep.subr.bf16.mxu0 0
  %872 = vmatpush1.bf16.msra.mxu0 0
  %873 = vmatprep.subr.bf16.mxu0 0
  %874 = vmatpush1.bf16.msra.mxu0 0
  %875 = vmatprep.subr.bf16.mxu0 0
  %876 = vmatpush1.bf16.msra.mxu0 0
  %877 = vmatprep.subr.bf16.mxu0 0
  %878 = vmatpush1.bf16.msra.mxu0 0
  %879 = vmatprep.subr.bf16.mxu0 0
  %880 = vmatpush1.bf16.msra.mxu0 0
  %881 = vmatprep.subr.bf16.mxu0 0
  %882 = vmatpush1.bf16.msra.mxu0 0
  %883 = vmatprep.subr.bf16.mxu0 0
  %884 = vmatpush1.bf16.msra.mxu0 0
  %885 = vmatprep.subr.bf16.mxu0 0
  %886 = vmatpush1.bf16.msra.mxu0 0
  %887 = vmatprep.subr.bf16.mxu0 0
  %888 = vmatpush1.bf16.msra.mxu0 0
  %889 = vmatprep.subr.bf16.mxu0 0
  %890 = vmatpush1.bf16.msra.mxu0 0
  %891 = vmatprep.subr.bf16.mxu0 0
  %892 = vmatpush1.bf16.msra.mxu0 0
  %893 = vmatprep.subr.bf16.mxu0 0
  %894 = vmatpush1.bf16.msra.mxu0 0
  %895 = vmatprep.subr.bf16.mxu0 0
  %896 = vmatpush1.bf16.msra.mxu0 0
  %897 = vmatprep.subr.bf16.mxu0 0
  %898 = vmatpush1.bf16.msra.mxu0 0
  %899 = vmatprep.mubr.bf16.mxu0 0
  %900 = vmatmul.mubr.bf16.gmra.mrb[0].mxu0 %v862
  %v901 = vpop.f32.mrb[0].mxu0
  %v902 = vadd.f32 0.0, %v901
  %v903 = vpop.f32.mrb[0].mxu0
  %v904 = vpop.f32.mrb[0].mxu0
  %v905 = vpop.f32.mrb[0].mxu0
  %906 = vdwg.mxu0
  %v908 = vsel %vm717, %v808, 0
  %v911 = vsel %vm817, %v391, 0
  %913 = vmatprep.subr.bf16.mxu0 0
  %914 = vmatpush1.bf16.msra.mxu0 %v911
  %915 = vmatprep.subr.bf16.mxu0 0
  %916 = vmatpush1.bf16.msra.mxu0 0
  %917 = vmatprep.subr.bf16.mxu0 0
  %918 = vmatpush1.bf16.msra.mxu0 0
  %919 = vmatprep.subr.bf16.mxu0 0
  %920 = vmatpush1.bf16.msra.mxu0 0
  %921 = vmatprep.subr.bf16.mxu0 0
  %922 = vmatpush1.bf16.msra.mxu0 0
  %923 = vmatprep.subr.bf16.mxu0 0
  %924 = vmatpush1.bf16.msra.mxu0 0
  %925 = vmatprep.subr.bf16.mxu0 0
  %926 = vmatpush1.bf16.msra.mxu0 0
  %927 = vmatprep.subr.bf16.mxu0 0
  %928 = vmatpush1.bf16.msra.mxu0 0
  %929 = vmatprep.subr.bf16.mxu0 0
  %930 = vmatpush1.bf16.msra.mxu0 0
  %931 = vmatprep.subr.bf16.mxu0 0
  %932 = vmatpush1.bf16.msra.mxu0 0
  %933 = vmatprep.subr.bf16.mxu0 0
  %934 = vmatpush1.bf16.msra.mxu0 0
  %935 = vmatprep.subr.bf16.mxu0 0
  %936 = vmatpush1.bf16.msra.mxu0 0
  %937 = vmatprep.subr.bf16.mxu0 0
  %938 = vmatpush1.bf16.msra.mxu0 0
  %939 = vmatprep.subr.bf16.mxu0 0
  %940 = vmatpush1.bf16.msra.mxu0 0
  %941 = vmatprep.subr.bf16.mxu0 0
  %942 = vmatpush1.bf16.msra.mxu0 0
  %943 = vmatprep.subr.bf16.mxu0 0
  %944 = vmatpush1.bf16.msra.mxu0 0
  %945 = vmatprep.mubr.bf16.mxu0 0
  %946 = vmatmul.mubr.bf16.gmra.mrb[0].mxu0 %v908
  %v947 = vpop.f32.mrb[0].mxu0
  %v948 = vadd.f32 0.0, %v947
  %v949 = vpop.f32.mrb[0].mxu0
  %v950 = vpop.f32.mrb[0].mxu0
  %v951 = vpop.f32.mrb[0].mxu0
  %952 = vdwg.mxu0
  %v954 = vsel %vm717, %v809, 0
  %v957 = vsel %vm817, %v392, 0
  %959 = vmatprep.subr.bf16.mxu0 0
  %960 = vmatpush1.bf16.msra.mxu0 %v957
  %961 = vmatprep.subr.bf16.mxu0 0
  %962 = vmatpush1.bf16.msra.mxu0 0
  %963 = vmatprep.subr.bf16.mxu0 0
  %964 = vmatpush1.bf16.msra.mxu0 0
  %965 = vmatprep.subr.bf16.mxu0 0
  %966 = vmatpush1.bf16.msra.mxu0 0
  %967 = vmatprep.subr.bf16.mxu0 0
  %968 = vmatpush1.bf16.msra.mxu0 0
  %969 = vmatprep.subr.bf16.mxu0 0
  %970 = vmatpush1.bf16.msra.mxu0 0
  %971 = vmatprep.subr.bf16.mxu0 0
  %972 = vmatpush1.bf16.msra.mxu0 0
  %973 = vmatprep.subr.bf16.mxu0 0
  %974 = vmatpush1.bf16.msra.mxu0 0
  %975 = vmatprep.subr.bf16.mxu0 0
  %976 = vmatpush1.bf16.msra.mxu0 0
  %977 = vmatprep.subr.bf16.mxu0 0
  %978 = vmatpush1.bf16.msra.mxu0 0
  %979 = vmatprep.subr.bf16.mxu0 0
  %980 = vmatpush1.bf16.msra.mxu0 0
  %981 = vmatprep.subr.bf16.mxu0 0
  %982 = vmatpush1.bf16.msra.mxu0 0
  %983 = vmatprep.subr.bf16.mxu0 0
  %984 = vmatpush1.bf16.msra.mxu0 0
  %985 = vmatprep.subr.bf16.mxu0 0
  %986 = vmatpush1.bf16.msra.mxu0 0
  %987 = vmatprep.subr.bf16.mxu0 0
  %988 = vmatpush1.bf16.msra.mxu0 0
  %989 = vmatprep.subr.bf16.mxu0 0
  %990 = vmatpush1.bf16.msra.mxu0 0
  %991 = vmatprep.mubr.bf16.mxu0 0
  %992 = vmatmul.mubr.bf16.gmra.mrb[0].mxu0 %v954
  %v993 = vpop.f32.mrb[0].mxu0
  %v994 = vadd.f32 0.0, %v993
  %v995 = vpop.f32.mrb[0].mxu0
  %v996 = vpop.f32.mrb[0].mxu0
  %v997 = vpop.f32.mrb[0].mxu0
  %998 = vdwg.mxu0
  %v1000 = vsel %vm717, %v810, 0
  %v1003 = vsel %vm817, %v393, 0
  %1005 = vmatprep.subr.bf16.mxu0 0
  %1006 = vmatpush1.bf16.msra.mxu0 %v1003
  %1007 = vmatprep.subr.bf16.mxu0 0
  %1008 = vmatpush1.bf16.msra.mxu0 0
  %1009 = vmatprep.subr.bf16.mxu0 0
  %1010 = vmatpush1.bf16.msra.mxu0 0
  %1011 = vmatprep.subr.bf16.mxu0 0
  %1012 = vmatpush1.bf16.msra.mxu0 0
  %1013 = vmatprep.subr.bf16.mxu0 0
  %1014 = vmatpush1.bf16.msra.mxu0 0
  %1015 = vmatprep.subr.bf16.mxu0 0
  %1016 = vmatpush1.bf16.msra.mxu0 0
  %1017 = vmatprep.subr.bf16.mxu0 0
  %1018 = vmatpush1.bf16.msra.mxu0 0
  %1019 = vmatprep.subr.bf16.mxu0 0
  %1020 = vmatpush1.bf16.msra.mxu0 0
  %1021 = vmatprep.subr.bf16.mxu0 0
  %1022 = vmatpush1.bf16.msra.mxu0 0
  %1023 = vmatprep.subr.bf16.mxu0 0
  %1024 = vmatpush1.bf16.msra.mxu0 0
  %1025 = vmatprep.subr.bf16.mxu0 0
  %1026 = vmatpush1.bf16.msra.mxu0 0
  %1027 = vmatprep.subr.bf16.mxu0 0
  %1028 = vmatpush1.bf16.msra.mxu0 0
  %1029 = vmatprep.subr.bf16.mxu0 0
  %1030 = vmatpush1.bf16.msra.mxu0 0
  %1031 = vmatprep.subr.bf16.mxu0 0
  %1032 = vmatpush1.bf16.msra.mxu0 0
  %1033 = vmatprep.subr.bf16.mxu0 0
  %1034 = vmatpush1.bf16.msra.mxu0 0
  %1035 = vmatprep.subr.bf16.mxu0 0
  %1036 = vmatpush1.bf16.msra.mxu0 0
  %1037 = vmatprep.mubr.bf16.mxu0 0
  %1038 = vmatmul.mubr.bf16.gmra.mrb[0].mxu0 %v1000
  %v1039 = vpop.f32.mrb[0].mxu0
  %v1040 = vadd.f32 0.0, %v1039
  %v1041 = vpop.f32.mrb[0].mxu0
  %v1042 = vpop.f32.mrb[0].mxu0
  %v1043 = vpop.f32.mrb[0].mxu0
  %1044 = vdwg.mxu0
  %v1046 = vsel %vm717, %v811, 0
  %v1049 = vsel %vm817, %v394, 0
  %1051 = vmatprep.subr.bf16.mxu0 0
  %1052 = vmatpush1.bf16.msra.mxu0 %v1049
  %1053 = vmatprep.subr.bf16.mxu0 0
  %1054 = vmatpush1.bf16.msra.mxu0 0
  %1055 = vmatprep.subr.bf16.mxu0 0
  %1056 = vmatpush1.bf16.msra.mxu0 0
  %1057 = vmatprep.subr.bf16.mxu0 0
  %1058 = vmatpush1.bf16.msra.mxu0 0
  %1059 = vmatprep.subr.bf16.mxu0 0
  %1060 = vmatpush1.bf16.msra.mxu0 0
  %1061 = vmatprep.subr.bf16.mxu0 0
  %1062 = vmatpush1.bf16.msra.mxu0 0
  %1063 = vmatprep.subr.bf16.mxu0 0
  %1064 = vmatpush1.bf16.msra.mxu0 0
  %1065 = vmatprep.subr.bf16.mxu0 0
  %1066 = vmatpush1.bf16.msra.mxu0 0
  %1067 = vmatprep.subr.bf16.mxu0 0
  %1068 = vmatpush1.bf16.msra.mxu0 0
  %1069 = vmatprep.subr.bf16.mxu0 0
  %1070 = vmatpush1.bf16.msra.mxu0 0
  %1071 = vmatprep.subr.bf16.mxu0 0
  %1072 = vmatpush1.bf16.msra.mxu0 0
  %1073 = vmatprep.subr.bf16.mxu0 0
  %1074 = vmatpush1.bf16.msra.mxu0 0
  %1075 = vmatprep.subr.bf16.mxu0 0
  %1076 = vmatpush1.bf16.msra.mxu0 0
  %1077 = vmatprep.subr.bf16.mxu0 0
  %1078 = vmatpush1.bf16.msra.mxu0 0
  %1079 = vmatprep.subr.bf16.mxu0 0
  %1080 = vmatpush1.bf16.msra.mxu0 0
  %1081 = vmatprep.subr.bf16.mxu0 0
  %1082 = vmatpush1.bf16.msra.mxu0 0
  %1083 = vmatprep.mubr.bf16.mxu0 0
  %1084 = vmatmul.mubr.bf16.gmra.mrb[0].mxu0 %v1046
  %v1085 = vpop.f32.mrb[0].mxu0
  %v1086 = vadd.f32 0.0, %v1085
  %v1087 = vpop.f32.mrb[0].mxu0
  %v1088 = vpop.f32.mrb[0].mxu0
  %v1089 = vpop.f32.mrb[0].mxu0
  %1090 = vdwg.mxu0
  %v1092 = vsel %vm717, %v812, 0
  %v1095 = vsel %vm817, %v395, 0
  %1097 = vmatprep.subr.bf16.mxu0 0
  %1098 = vmatpush1.bf16.msra.mxu0 %v1095
  %1099 = vmatprep.subr.bf16.mxu0 0
  %1100 = vmatpush1.bf16.msra.mxu0 0
  %1101 = vmatprep.subr.bf16.mxu0 0
  %1102 = vmatpush1.bf16.msra.mxu0 0
  %1103 = vmatprep.subr.bf16.mxu0 0
  %1104 = vmatpush1.bf16.msra.mxu0 0
  %1105 = vmatprep.subr.bf16.mxu0 0
  %1106 = vmatpush1.bf16.msra.mxu0 0
  %1107 = vmatprep.subr.bf16.mxu0 0
  %1108 = vmatpush1.bf16.msra.mxu0 0
  %1109 = vmatprep.subr.bf16.mxu0 0
  %1110 = vmatpush1.bf16.msra.mxu0 0
  %1111 = vmatprep.subr.bf16.mxu0 0
  %1112 = vmatpush1.bf16.msra.mxu0 0
  %1113 = vmatprep.subr.bf16.mxu0 0
  %1114 = vmatpush1.bf16.msra.mxu0 0
  %1115 = vmatprep.subr.bf16.mxu0 0
  %1116 = vmatpush1.bf16.msra.mxu0 0
  %1117 = vmatprep.subr.bf16.mxu0 0
  %1118 = vmatpush1.bf16.msra.mxu0 0
  %1119 = vmatprep.subr.bf16.mxu0 0
  %1120 = vmatpush1.bf16.msra.mxu0 0
  %1121 = vmatprep.subr.bf16.mxu0 0
  %1122 = vmatpush1.bf16.msra.mxu0 0
  %1123 = vmatprep.subr.bf16.mxu0 0
  %1124 = vmatpush1.bf16.msra.mxu0 0
  %1125 = vmatprep.subr.bf16.mxu0 0
  %1126 = vmatpush1.bf16.msra.mxu0 0
  %1127 = vmatprep.subr.bf16.mxu0 0
  %1128 = vmatpush1.bf16.msra.mxu0 0
  %1129 = vmatprep.mubr.bf16.mxu0 0
  %1130 = vmatmul.mubr.bf16.gmra.mrb[0].mxu0 %v1092
  %v1131 = vpop.f32.mrb[0].mxu0
  %v1132 = vadd.f32 0.0, %v1131
  %v1133 = vpop.f32.mrb[0].mxu0
  %v1134 = vpop.f32.mrb[0].mxu0
  %v1135 = vpop.f32.mrb[0].mxu0
  %1136 = vdwg.mxu0
  %v1138 = vsel %vm717, %v813, 0
  %v1141 = vsel %vm817, %v396, 0
  %1143 = vmatprep.subr.bf16.mxu0 0
  %1144 = vmatpush1.bf16.msra.mxu0 %v1141
  %1145 = vmatprep.subr.bf16.mxu0 0
  %1146 = vmatpush1.bf16.msra.mxu0 0
  %1147 = vmatprep.subr.bf16.mxu0 0
  %1148 = vmatpush1.bf16.msra.mxu0 0
  %1149 = vmatprep.subr.bf16.mxu0 0
  %1150 = vmatpush1.bf16.msra.mxu0 0
  %1151 = vmatprep.subr.bf16.mxu0 0
  %1152 = vmatpush1.bf16.msra.mxu0 0
  %1153 = vmatprep.subr.bf16.mxu0 0
  %1154 = vmatpush1.bf16.msra.mxu0 0
  %1155 = vmatprep.subr.bf16.mxu0 0
  %1156 = vmatpush1.bf16.msra.mxu0 0
  %1157 = vmatprep.subr.bf16.mxu0 0
  %1158 = vmatpush1.bf16.msra.mxu0 0
  %1159 = vmatprep.subr.bf16.mxu0 0
  %1160 = vmatpush1.bf16.msra.mxu0 0
  %1161 = vmatprep.subr.bf16.mxu0 0
  %1162 = vmatpush1.bf16.msra.mxu0 0
  %1163 = vmatprep.subr.bf16.mxu0 0
  %1164 = vmatpush1.bf16.msra.mxu0 0
  %1165 = vmatprep.subr.bf16.mxu0 0
  %1166 = vmatpush1.bf16.msra.mxu0 0
  %1167 = vmatprep.subr.bf16.mxu0 0
  %1168 = vmatpush1.bf16.msra.mxu0 0
  %1169 = vmatprep.subr.bf16.mxu0 0
  %1170 = vmatpush1.bf16.msra.mxu0 0
  %1171 = vmatprep.subr.bf16.mxu0 0
  %1172 = vmatpush1.bf16.msra.mxu0 0
  %1173 = vmatprep.subr.bf16.mxu0 0
  %1174 = vmatpush1.bf16.msra.mxu0 0
  %1175 = vmatprep.mubr.bf16.mxu0 0
  %1176 = vmatmul.mubr.bf16.gmra.mrb[0].mxu0 %v1138
  %v1177 = vpop.f32.mrb[0].mxu0
  %v1178 = vadd.f32 0.0, %v1177
  %v1179 = vpop.f32.mrb[0].mxu0
  %v1180 = vpop.f32.mrb[0].mxu0
  %v1181 = vpop.f32.mrb[0].mxu0
  %1182 = vdwg.mxu0
  %v1183 = vld [vmem:[%s2] sm:$0xf]
  %v1184 = vld [vmem:[%s2 + $0x4] sm:$0xf]
  %v1185 = vld [vmem:[%s2 + $0x8] sm:$0xf]
  %v1186 = vld [vmem:[%s2 + $0xc] sm:$0xf]
  %v1187 = vld [vmem:[%s2 + $0x10] sm:$0xf]
  %v1188 = vld [vmem:[%s2 + $0x14] sm:$0xf]
  %v1189 = vld [vmem:[%s2 + $0x18] sm:$0xf]
  %v1190 = vld [vmem:[%s2 + $0x1c] sm:$0xf]
  %v1191 = vld [vmem:[%s2 + $0x20] sm:$0xf]
  %v1192 = vld [vmem:[%s2 + $0x24] sm:$0xf]
  %v1193 = vld [vmem:[%s2 + $0x28] sm:$0xf]
  %v1194 = vld [vmem:[%s2 + $0x2c] sm:$0xf]
  %v1195 = vld [vmem:[%s2 + $0x30] sm:$0xf]
  %v1196 = vld [vmem:[%s2 + $0x34] sm:$0xf]
  %v1197 = vld [vmem:[%s2 + $0x38] sm:$0xf]
  %v1198 = vld [vmem:[%s2 + $0x3c] sm:$0xf]
  %v1199 = vld [vmem:[%s2 + $0x40] sm:$0xf]
  %v1200 = vld [vmem:[%s2 + $0x44] sm:$0xf]
  %v1201 = vld [vmem:[%s2 + $0x48] sm:$0xf]
  %v1202 = vld [vmem:[%s2 + $0x4c] sm:$0xf]
  %v1203 = vld [vmem:[%s2 + $0x50] sm:$0xf]
  %v1204 = vld [vmem:[%s2 + $0x54] sm:$0xf]
  %v1205 = vld [vmem:[%s2 + $0x58] sm:$0xf]
  %v1206 = vld [vmem:[%s2 + $0x5c] sm:$0xf]
  %v1207 = vld [vmem:[%s2 + $0x60] sm:$0xf]
  %v1208 = vld [vmem:[%s2 + $0x64] sm:$0xf]
  %v1209 = vld [vmem:[%s2 + $0x68] sm:$0xf]
  %v1210 = vld [vmem:[%s2 + $0x6c] sm:$0xf]
  %v1211 = vld [vmem:[%s2 + $0x70] sm:$0xf]
  %v1212 = vld [vmem:[%s2 + $0x74] sm:$0xf]
  %v1213 = vld [vmem:[%s2 + $0x78] sm:$0xf]
  %v1214 = vld [vmem:[%s2 + $0x7c] sm:$0xf]
  %v1215 = vpack.c.bf16 %v170, %v169
  %v1216 = vpack.c.bf16 %v172, %v171
  %v1217 = vpack.c.bf16 %v174, %v173
  %v1218 = vpack.c.bf16 %v176, %v175
  %v1219 = vpack.c.bf16 %v902, %v856
  %v1220 = vpack.c.bf16 %v994, %v948
  %v1221 = vpack.c.bf16 %v1086, %v1040
  %v1222 = vpack.c.bf16 %v1178, %v1132
  %v1239 = vunpack.c.l.b16 %v1199
  %v1240 = vunpack.c.l.b16 %v1200
  %v1241 = vunpack.c.l.b16 %v1201
  %v1242 = vunpack.c.l.b16 %v1202
  %v1243 = vunpack.c.l.b16 %v1203
  %v1244 = vunpack.c.l.b16 %v1204
  %v1245 = vunpack.c.l.b16 %v1205
  %v1246 = vunpack.c.l.b16 %v1206
  %v1247 = vunpack.c.l.b16 %v1207
  %v1248 = vunpack.c.l.b16 %v1208
  %v1249 = vunpack.c.l.b16 %v1209
  %v1250 = vunpack.c.l.b16 %v1210
  %v1251 = vunpack.c.l.b16 %v1211
  %v1252 = vunpack.c.l.b16 %v1212
  %v1253 = vunpack.c.l.b16 %v1213
  %v1254 = vunpack.c.l.b16 %v1214
  %v1255 = vpack.c.b16 %v1240, %v1239
  %v1256 = vpack.c.b16 %v1242, %v1241
  %v1257 = vpack.c.b16 %v1244, %v1243
  %v1258 = vpack.c.b16 %v1246, %v1245
  %v1259 = vpack.c.b16 %v1248, %v1247
  %v1260 = vpack.c.b16 %v1250, %v1249
  %v1261 = vpack.c.b16 %v1252, %v1251
  %v1262 = vpack.c.b16 %v1254, %v1253
  %1271 = vmatprep.subr.bf16.mxu0 0
  %1272 = vmatpush1.bf16.msra.mxu0 %v1255
  %1273 = vmatprep.subr.bf16.mxu0 0
  %1274 = vmatpush1.bf16.msra.mxu0 %v1256
  %1275 = vmatprep.subr.bf16.mxu0 0
  %1276 = vmatpush1.bf16.msra.mxu0 %v1257
  %1277 = vmatprep.subr.bf16.mxu0 0
  %1278 = vmatpush1.bf16.msra.mxu0 %v1258
  %1279 = vmatprep.subr.bf16.mxu0 0
  %1280 = vmatpush1.bf16.msra.mxu0 %v1259
  %1281 = vmatprep.subr.bf16.mxu0 0
  %1282 = vmatpush1.bf16.msra.mxu0 %v1260
  %1283 = vmatprep.subr.bf16.mxu0 0
  %1284 = vmatpush1.bf16.msra.mxu0 %v1261
  %1285 = vmatprep.subr.bf16.mxu0 0
  %1286 = vmatpush1.bf16.msra.mxu0 %v1262
  %1287 = vmatprep.subr.bf16.mxu0 0
  %1288 = vmatpush1.bf16.msra.mxu0 0
  %1289 = vmatprep.subr.bf16.mxu0 0
  %1290 = vmatpush1.bf16.msra.mxu0 0
  %1291 = vmatprep.subr.bf16.mxu0 0
  %1292 = vmatpush1.bf16.msra.mxu0 0
  %1293 = vmatprep.subr.bf16.mxu0 0
  %1294 = vmatpush1.bf16.msra.mxu0 0
  %1295 = vmatprep.subr.bf16.mxu0 0
  %1296 = vmatpush1.bf16.msra.mxu0 0
  %1297 = vmatprep.subr.bf16.mxu0 0
  %1298 = vmatpush1.bf16.msra.mxu0 0
  %1299 = vmatprep.subr.bf16.mxu0 0
  %1300 = vmatpush1.bf16.msra.mxu0 0
  %1301 = vmatprep.subr.bf16.mxu0 0
  %1302 = vmatpush1.bf16.msra.mxu0 0
  %1303 = vmatprep.mubr.bf16.mxu0 0
  %1304 = vmatmul.mubr.bf16.gmra.mrb[0].mxu0 %v1219
  %v1305 = vpop.f32.mrb[0].mxu0
  %v1306 = vadd.f32 0.0, %v1305
  %v1307 = vpop.f32.mrb[0].mxu0
  %v1308 = vpop.f32.mrb[0].mxu0
  %v1309 = vadd.f32 0.0, %v1308
  %v1310 = vpop.f32.mrb[0].mxu0
  %1311 = vmatprep.mubr.bf16.mxu0 0
  %1312 = vmatmul.mubr.bf16.gmra.mrb[0].mxu0 %v1220
  %v1313 = vpop.f32.mrb[0].mxu0
  %v1314 = vadd.f32 0.0, %v1313
  %v1315 = vpop.f32.mrb[0].mxu0
  %v1316 = vpop.f32.mrb[0].mxu0
  %v1317 = vadd.f32 0.0, %v1316
  %v1318 = vpop.f32.mrb[0].mxu0
  %1319 = vmatprep.mubr.bf16.mxu0 0
  %1320 = vmatmul.mubr.bf16.gmra.mrb[0].mxu0 %v1221
  %v1321 = vpop.f32.mrb[0].mxu0
  %v1322 = vadd.f32 0.0, %v1321
  %v1323 = vpop.f32.mrb[0].mxu0
  %v1324 = vpop.f32.mrb[0].mxu0
  %v1325 = vadd.f32 0.0, %v1324
  %v1326 = vpop.f32.mrb[0].mxu0
  %1327 = vmatprep.mubr.bf16.mxu0 0
  %1328 = vmatmul.mubr.bf16.gmra.mrb[0].mxu0 %v1222
  %v1329 = vpop.f32.mrb[0].mxu0
  %v1330 = vadd.f32 0.0, %v1329
  %v1331 = vpop.f32.mrb[0].mxu0
  %v1332 = vpop.f32.mrb[0].mxu0
  %v1333 = vadd.f32 0.0, %v1332
  %v1334 = vpop.f32.mrb[0].mxu0
  %1335 = vdwg.mxu0
  %v1352 = vunpack.c.l.b16 %v1183
  %v1353 = vunpack.c.l.b16 %v1184
  %v1354 = vunpack.c.l.b16 %v1185
  %v1355 = vunpack.c.l.b16 %v1186
  %v1356 = vunpack.c.l.b16 %v1187
  %v1357 = vunpack.c.l.b16 %v1188
  %v1358 = vunpack.c.l.b16 %v1189
  %v1359 = vunpack.c.l.b16 %v1190
  %v1360 = vunpack.c.l.b16 %v1191
  %v1361 = vunpack.c.l.b16 %v1192
  %v1362 = vunpack.c.l.b16 %v1193
  %v1363 = vunpack.c.l.b16 %v1194
  %v1364 = vunpack.c.l.b16 %v1195
  %v1365 = vunpack.c.l.b16 %v1196
  %v1366 = vunpack.c.l.b16 %v1197
  %v1367 = vunpack.c.l.b16 %v1198
  %v1368 = vpack.c.b16 %v1353, %v1352
  %v1369 = vpack.c.b16 %v1355, %v1354
  %v1370 = vpack.c.b16 %v1357, %v1356
  %v1371 = vpack.c.b16 %v1359, %v1358
  %v1372 = vpack.c.b16 %v1361, %v1360
  %v1373 = vpack.c.b16 %v1363, %v1362
  %v1374 = vpack.c.b16 %v1365, %v1364
  %v1375 = vpack.c.b16 %v1367, %v1366
  %1384 = vmatprep.subr.bf16.mxu0 0
  %1385 = vmatpush1.bf16.msra.mxu0 %v1368
  %1386 = vmatprep.subr.bf16.mxu0 0
  %1387 = vmatpush1.bf16.msra.mxu0 %v1369
  %1388 = vmatprep.subr.bf16.mxu0 0
  %1389 = vmatpush1.bf16.msra.mxu0 %v1370
  %1390 = vmatprep.subr.bf16.mxu0 0
  %1391 = vmatpush1.bf16.msra.mxu0 %v1371
  %1392 = vmatprep.subr.bf16.mxu0 0
  %1393 = vmatpush1.bf16.msra.mxu0 %v1372
  %1394 = vmatprep.subr.bf16.mxu0 0
  %1395 = vmatpush1.bf16.msra.mxu0 %v1373
  %1396 = vmatprep.subr.bf16.mxu0 0
  %1397 = vmatpush1.bf16.msra.mxu0 %v1374
  %1398 = vmatprep.subr.bf16.mxu0 0
  %1399 = vmatpush1.bf16.msra.mxu0 %v1375
  %1400 = vmatprep.subr.bf16.mxu0 0
  %1401 = vmatpush1.bf16.msra.mxu0 0
  %1402 = vmatprep.subr.bf16.mxu0 0
  %1403 = vmatpush1.bf16.msra.mxu0 0
  %1404 = vmatprep.subr.bf16.mxu0 0
  %1405 = vmatpush1.bf16.msra.mxu0 0
  %1406 = vmatprep.subr.bf16.mxu0 0
  %1407 = vmatpush1.bf16.msra.mxu0 0
  %1408 = vmatprep.subr.bf16.mxu0 0
  %1409 = vmatpush1.bf16.msra.mxu0 0
  %1410 = vmatprep.subr.bf16.mxu0 0
  %1411 = vmatpush1.bf16.msra.mxu0 0
  %1412 = vmatprep.subr.bf16.mxu0 0
  %1413 = vmatpush1.bf16.msra.mxu0 0
  %1414 = vmatprep.subr.bf16.mxu0 0
  %1415 = vmatpush1.bf16.msra.mxu0 0
  %1416 = vmatprep.mubr.bf16.mxu0 0
  %1417 = vmatmul.mubr.bf16.gmra.mrb[0].mxu0 %v1215
  %v1418 = vpop.f32.mrb[0].mxu0
  %v1419 = vadd.f32 %v1306, %v1418
  %v1420 = vpop.f32.mrb[0].mxu0
  %v1421 = vpop.f32.mrb[0].mxu0
  %v1422 = vadd.f32 %v1309, %v1421
  %v1423 = vpop.f32.mrb[0].mxu0
  %1424 = vmatprep.mubr.bf16.mxu0 0
  %1425 = vmatmul.mubr.bf16.gmra.mrb[0].mxu0 %v1216
  %v1426 = vpop.f32.mrb[0].mxu0
  %v1427 = vadd.f32 %v1314, %v1426
  %v1428 = vpop.f32.mrb[0].mxu0
  %v1429 = vpop.f32.mrb[0].mxu0
  %v1430 = vadd.f32 %v1317, %v1429
  %v1431 = vpop.f32.mrb[0].mxu0
  %1432 = vmatprep.mubr.bf16.mxu0 0
  %1433 = vmatmul.mubr.bf16.gmra.mrb[0].mxu0 %v1217
  %v1434 = vpop.f32.mrb[0].mxu0
  %v1435 = vadd.f32 %v1322, %v1434
  %v1436 = vpop.f32.mrb[0].mxu0
  %v1437 = vpop.f32.mrb[0].mxu0
  %v1438 = vadd.f32 %v1325, %v1437
  %v1439 = vpop.f32.mrb[0].mxu0
  %1440 = vmatprep.mubr.bf16.mxu0 0
  %1441 = vmatmul.mubr.bf16.gmra.mrb[0].mxu0 %v1218
  %v1442 = vpop.f32.mrb[0].mxu0
  %v1443 = vadd.f32 %v1330, %v1442
  %v1444 = vpop.f32.mrb[0].mxu0
  %v1445 = vpop.f32.mrb[0].mxu0
  %v1446 = vadd.f32 %v1333, %v1445
  %v1447 = vpop.f32.mrb[0].mxu0
  %1448 = vdwg.mxu0
  %v1449 = vld [vmem:[%s3] sm:$0x1]
  %v1451 = vlaneseq
  %v1452 = vshrl.u32 %v1451, 7
  %v1453 = vsub.s32 0, %v1452
  %v1454 = vrot.slane %v1449, %v1453
  %v1456 = vadd.f32 %v1419, %v1454
  %v1457 = vadd.f32 %v1422, %v1454
  %v1458 = vadd.f32 %v1427, %v1454
  %v1459 = vadd.f32 %v1430, %v1454
  %v1460 = vadd.f32 %v1435, %v1454
  %v1461 = vadd.f32 %v1438, %v1454
  %v1462 = vadd.f32 %v1443, %v1454
  %v1463 = vadd.f32 %v1446, %v1454
  %1464 = vmax.xlane.f32.xlu0 %v1456
  %v1465 = vpop.xlane.xlu0 %1464
  %1466 = vmax.xlane.f32.xlu0 %v1457
  %v1467 = vpop.xlane.xlu0 %1466
  %1468 = vmax.xlane.f32.xlu0 %v1458
  %v1469 = vpop.xlane.xlu0 %1468
  %1470 = vmax.xlane.f32.xlu0 %v1459
  %v1471 = vpop.xlane.xlu0 %1470
  %1472 = vmax.xlane.f32.xlu0 %v1460
  %v1473 = vpop.xlane.xlu0 %1472
  %1474 = vmax.xlane.f32.xlu0 %v1461
  %v1475 = vpop.xlane.xlu0 %1474
  %1476 = vmax.xlane.f32.xlu0 %v1462
  %v1477 = vpop.xlane.xlu0 %1476
  %1478 = vmax.xlane.f32.xlu0 %v1463
  %v1479 = vpop.xlane.xlu0 %1478
  %v1480 = vsub.f32 %v1456, %v1465
  %v1481 = vsub.f32 %v1457, %v1467
  %v1482 = vsub.f32 %v1458, %v1469
  %v1483 = vsub.f32 %v1459, %v1471
  %v1484 = vsub.f32 %v1460, %v1473
  %v1485 = vsub.f32 %v1461, %v1475
  %v1486 = vsub.f32 %v1462, %v1477
  %v1487 = vsub.f32 %v1463, %v1479
  %v1488 = vmul.f32 %v1480, 1.442695
  %v1489 = vpow.pop %v1488
  %v1490 = vmul.f32 %v1481, 1.442695
  %v1491 = vpow.pop %v1490
  %v1492 = vmul.f32 %v1482, 1.442695
  %v1493 = vpow.pop %v1492
  %v1494 = vmul.f32 %v1483, 1.442695
  %v1495 = vpow.pop %v1494
  %v1496 = vmul.f32 %v1484, 1.442695
  %v1497 = vpow.pop %v1496
  %v1498 = vmul.f32 %v1485, 1.442695
  %v1499 = vpow.pop %v1498
  %v1500 = vmul.f32 %v1486, 1.442695
  %v1501 = vpow.pop %v1500
  %v1502 = vmul.f32 %v1487, 1.442695
  %v1503 = vpow.pop %v1502
  %1504 = vadd.xlane.f32.xlu0 %v1489
  %v1505 = vpop.xlane.xlu0 %1504
  %1506 = vadd.xlane.f32.xlu0 %v1491
  %v1507 = vpop.xlane.xlu0 %1506
  %1508 = vadd.xlane.f32.xlu0 %v1493
  %v1509 = vpop.xlane.xlu0 %1508
  %1510 = vadd.xlane.f32.xlu0 %v1495
  %v1511 = vpop.xlane.xlu0 %1510
  %1512 = vadd.xlane.f32.xlu0 %v1497
  %v1513 = vpop.xlane.xlu0 %1512
  %1514 = vadd.xlane.f32.xlu0 %v1499
  %v1515 = vpop.xlane.xlu0 %1514
  %1516 = vadd.xlane.f32.xlu0 %v1501
  %v1517 = vpop.xlane.xlu0 %1516
  %1518 = vadd.xlane.f32.xlu0 %v1503
  %v1519 = vpop.xlane.xlu0 %1518
  %v1520 = vlog2.pop %v1505
  %v1521 = vmul.f32 %v1520, 0.6931472
  %v1522 = vlog2.pop %v1507
  %v1523 = vmul.f32 %v1522, 0.6931472
  %v1524 = vlog2.pop %v1509
  %v1525 = vmul.f32 %v1524, 0.6931472
  %v1526 = vlog2.pop %v1511
  %v1527 = vmul.f32 %v1526, 0.6931472
  %v1528 = vlog2.pop %v1513
  %v1529 = vmul.f32 %v1528, 0.6931472
  %v1530 = vlog2.pop %v1515
  %v1531 = vmul.f32 %v1530, 0.6931472
  %v1532 = vlog2.pop %v1517
  %v1533 = vmul.f32 %v1532, 0.6931472
  %v1534 = vlog2.pop %v1519
  %v1535 = vmul.f32 %v1534, 0.6931472
  %v1536 = vsub.f32 %v1480, %v1521
  %v1537 = vsub.f32 %v1481, %v1523
  %v1538 = vsub.f32 %v1482, %v1525
  %v1539 = vsub.f32 %v1483, %v1527
  %v1540 = vsub.f32 %v1484, %v1529
  %v1541 = vsub.f32 %v1485, %v1531
  %v1542 = vsub.f32 %v1486, %v1533
  %v1543 = vsub.f32 %v1487, %v1535
  %1544 = vst [vmem:[%s4] sm:$0xff] %v1536
  %1545 = vst [vmem:[%s4 + $0x8] sm:$0xff] %v1537
  %1546 = vst [vmem:[%s4 + $0x10] sm:$0xff] %v1538
  %1547 = vst [vmem:[%s4 + $0x18] sm:$0xff] %v1539
  %1548 = vst [vmem:[%s4 + $0x20] sm:$0xff] %v1540
  %1549 = vst [vmem:[%s4 + $0x28] sm:$0xff] %v1541
  %1550 = vst [vmem:[%s4 + $0x30] sm:$0xff] %v1542
  %1551 = vst [vmem:[%s4 + $0x38] sm:$0xff] %v1543
  // Predicated region
  $region18: #{trajpre_local_attn_long_forward.3} parent=0 // pred_check
    _
  $region19: #{trajpre_local_attn_long_forward.3} parent=0 // pred_check_branch
    %1553 = sbr.rel (0) target = $region21
  $region20: #{trajpre_local_attn_long_forward.3} parent=0 // pred_region
    _
  $region21: #{trajpre_local_attn_long_forward.3} parent=0 // pred_fallthru
    _
  // Predicated region
  $region22: #{trajpre_local_attn_long_forward.3} parent=0 // pred_check
    _
  $region23: #{trajpre_local_attn_long_forward.3} parent=0 // pred_check_branch
    %1555 = sbr.rel (0) target = $region25
  $region24: #{trajpre_local_attn_long_forward.3} parent=0 // pred_region
    _
  $region25: #{trajpre_local_attn_long_forward.3} parent=0 // pred_fallthru
    _

// kernel: trajpre_local_attn_long_forward.2
$region0: #{trajpre_local_attn_long_forward.2}
  #allocation0 [shape = 'u32[]', space=smem, size = 0x4, offset = 0x4, fixed_abs, tag = 'smem constant byte address 0x4 - core index']
  #allocation1 [shape = 'u32[144,128]{1,0:T(1,128)}', space=vmem, size = 0x12000, scoped, tag = 'internal scratch']
  #allocation2 [shape = 'f32[96,384]{1,0:T(8,128)}', space=vmem, size = 0x24000, scoped, tag = 'scratch operand']
  #allocation3 [shape = 'f32[8,128]{1,0:T(8,128)}', space=vmem, size = 0x1000, scoped, tag = 'scratch operand']
  #allocation4 [shape = 's32[1]{0}', space=sflag, size = 0x4, scoped, tag = 'scoped memory for trajpre_local_attn_long_forward.2']
  #allocation5 [shape = 'u8[512]{0}', space=smem, size = 0x200, scoped, tag = 'prefetched SMEM operand 0']
  %s0 = inlined_call_operand.vmem [shape: s32[2], index: 0, kind: input, shape index: {}]
  %s1 = inlined_call_operand.vmem [shape: s32[2,8,1], index: 1, kind: input, shape index: {}]
  %s2 = inlined_call_operand.vmem [shape: bf16[2,96,48], index: 2, kind: input, shape index: {}]
  %s3 = inlined_call_operand.vmem [shape: bf16[2,48,384], index: 3, kind: input, shape index: {}]
  %s4 = inlined_call_operand.vmem [shape: bf16[2,128,384], index: 4, kind: input, shape index: {}]
  %s5 = inlined_call_operand.vmem [shape: f32[2,1,384], index: 5, kind: input, shape index: {}]
  %s6 = inlined_call_operand.vmem [shape: f32[2,1,128], index: 6, kind: input, shape index: {}]
  %s7 = inlined_call_operand.vmem [shape: f32[2,12,8,128], index: 7, kind: output, shape index: {}]
  %s8 = sld [smem:[#allocation0]]
  $region64: #{trajpre_local_attn_long_forward.2} parent=0
    _
  %s10 = ssub.s32 1, %s8
  %s11 = scalar_select 0, %s10, %s8
  %s12 = sshll.u32 %s0, 4
  %s13 = int_to_ptr.vmem [resolvable:$true] %s12
  %15 = dma.vmem_to_smem %s13, 16, [#allocation5], [#allocation4]
  %16 = dma.done [#allocation4], 16
  %17 = sfence
  loop: start=0, step=1, limit=4
  $region2: #{trajpre_local_attn_long_forward.2} parent=0 // loop_pre_header
    _
  $region3: #{trajpre_local_attn_long_forward.2} parent=0 // loop_header
    %s19 = sphi 0, %s23
    %p20 = scmp.ge.s32.totalorder %s19, 4
    %s29 = sphi 0, %s31
    %s32 = sphi 0, %s29
    %s33 = sphi 0, %s32
    %s49 = sphi 0, %s33
    %s55 = sphi 0, %s57
    %s58 = sphi 0, %s55
    %s59 = sphi 0, %s58
    %s75 = sphi 0, %s59
    %s81 = sphi 0, %s83
    %s84 = sphi 0, %s81
    %s85 = sphi 0, %s84
    %s101 = sphi 0, %s85
    %s107 = sphi 0, %s109
    %s110 = sphi 0, %s107
    %s111 = sphi 0, %s110
    %s127 = sphi 0, %s111
    %s133 = sphi 0, %s135
    %s136 = sphi 0, %s133
    %s137 = sphi 0, %s136
    %s153 = sphi 0, %s137
    %s159 = sphi 0, %s161
    %s162 = sphi 0, %s159
    %s163 = sphi 0, %s162
    %s179 = sphi 0, %s163
    %s185 = sphi 0, %s187
    %s188 = sphi 0, %s185
    %s189 = sphi 0, %s188
    %s205 = sphi 0, %s189
  $region4: #{trajpre_local_attn_long_forward.2} parent=0 // loop_header_branch
    %22 = sbr.rel (%p20) target = $region8
  $region5: #{trajpre_local_attn_long_forward.2} parent=0 // loop_body
    %s24 = ssub.s32 %s19, 1
    %s25 = ssub.s32 %s19, 2
    %s26 = sadd.s32 %s19, 1
    %s27 = ssub.s32 %s19, %s26
    %p28 = scmp.eq.s32.totalorder %s27, 0
    %s30 = sadd.s32 %s29, 1
    %s31 = scalar_select %p28, %s29, %s30
    %p34 = pneg %p28
    %p35 = scmp.eq.s32.totalorder %s19, 1
    %p36 = por %p34, %p35
    %p37 = scmp.ne.s32.totalorder %s29, %s32
    %p38 = scmp.eq.s32.totalorder %s19, 0
    %p39 = por %p37, %p38
    %p40 = scmp.ne.s32.totalorder %s29, %s32
    %p41 = scmp.eq.s32.totalorder %s24, 1
    %p42 = por %p40, %p41
    %p43 = scmp.ne.s32.totalorder %s32, %s33
    %p44 = scmp.eq.s32.totalorder %s24, 0
    %p45 = por %p43, %p44
    %p46 = scmp.ne.s32.totalorder %s32, %s33
    %p47 = scmp.eq.s32.totalorder %s25, 1
    %p48 = por %p46, %p47
    %p50 = scmp.ne.s32.totalorder %s33, %s49
    %p51 = scmp.eq.s32.totalorder %s25, 0
    %p52 = por %p50, %p51
    %s53 = ssub.s32 %s19, %s26
    %p54 = scmp.eq.s32.totalorder %s53, 0
    %s56 = sadd.s32 %s55, 1
    %s57 = scalar_select %p54, %s55, %s56
    %p60 = pneg %p54
    %p61 = scmp.eq.s32.totalorder %s19, 1
    %p62 = por %p60, %p61
    %p63 = scmp.ne.s32.totalorder %s55, %s58
    %p64 = scmp.eq.s32.totalorder %s19, 0
    %p65 = por %p63, %p64
    %p66 = scmp.ne.s32.totalorder %s55, %s58
    %p67 = scmp.eq.s32.totalorder %s24, 1
    %p68 = por %p66, %p67
    %p69 = scmp.ne.s32.totalorder %s58, %s59
    %p70 = scmp.eq.s32.totalorder %s24, 0
    %p71 = por %p69, %p70
    %p72 = scmp.ne.s32.totalorder %s58, %s59
    %p73 = scmp.eq.s32.totalorder %s25, 1
    %p74 = por %p72, %p73
    %p76 = scmp.ne.s32.totalorder %s59, %s75
    %p77 = scmp.eq.s32.totalorder %s25, 0
    %p78 = por %p76, %p77
    %s79 = ssub.s32 %s19, %s26
    %p80 = scmp.eq.s32.totalorder %s79, 0
    %s82 = sadd.s32 %s81, 1
    %s83 = scalar_select %p80, %s81, %s82
    %p86 = pneg %p80
    %p87 = scmp.eq.s32.totalorder %s19, 1
    %p88 = por %p86, %p87
    %p89 = scmp.ne.s32.totalorder %s81, %s84
    %p90 = scmp.eq.s32.totalorder %s19, 0
    %p91 = por %p89, %p90
    %p92 = scmp.ne.s32.totalorder %s81, %s84
    %p93 = scmp.eq.s32.totalorder %s24, 1
    %p94 = por %p92, %p93
    %p95 = scmp.ne.s32.totalorder %s84, %s85
    %p96 = scmp.eq.s32.totalorder %s24, 0
    %p97 = por %p95, %p96
    %p98 = scmp.ne.s32.totalorder %s84, %s85
    %p99 = scmp.eq.s32.totalorder %s25, 1
    %p100 = por %p98, %p99
    %p102 = scmp.ne.s32.totalorder %s85, %s101
    %p103 = scmp.eq.s32.totalorder %s25, 0
    %p104 = por %p102, %p103
    %s105 = ssub.s32 %s19, %s26
    %p106 = scmp.eq.s32.totalorder %s105, 0
    %s108 = sadd.s32 %s107, 1
    %s109 = scalar_select %p106, %s107, %s108
    %p112 = pneg %p106
    %p113 = scmp.eq.s32.totalorder %s19, 1
    %p114 = por %p112, %p113
    %p115 = scmp.ne.s32.totalorder %s107, %s110
    %p116 = scmp.eq.s32.totalorder %s19, 0
    %p117 = por %p115, %p116
    %p118 = scmp.ne.s32.totalorder %s107, %s110
    %p119 = scmp.eq.s32.totalorder %s24, 1
    %p120 = por %p118, %p119
    %p121 = scmp.ne.s32.totalorder %s110, %s111
    %p122 = scmp.eq.s32.totalorder %s24, 0
    %p123 = por %p121, %p122
    %p124 = scmp.ne.s32.totalorder %s110, %s111
    %p125 = scmp.eq.s32.totalorder %s25, 1
    %p126 = por %p124, %p125
    %p128 = scmp.ne.s32.totalorder %s111, %s127
    %p129 = scmp.eq.s32.totalorder %s25, 0
    %p130 = por %p128, %p129
    %s131 = ssub.s32 %s19, %s26
    %p132 = scmp.eq.s32.totalorder %s131, 0
    %s134 = sadd.s32 %s133, 1
    %s135 = scalar_select %p132, %s133, %s134
    %p138 = pneg %p132
    %p139 = scmp.eq.s32.totalorder %s19, 1
    %p140 = por %p138, %p139
    %p141 = scmp.ne.s32.totalorder %s133, %s136
    %p142 = scmp.eq.s32.totalorder %s19, 0
    %p143 = por %p141, %p142
    %p144 = scmp.ne.s32.totalorder %s133, %s136
    %p145 = scmp.eq.s32.totalorder %s24, 1
    %p146 = por %p144, %p145
    %p147 = scmp.ne.s32.totalorder %s136, %s137
    %p148 = scmp.eq.s32.totalorder %s24, 0
    %p149 = por %p147, %p148
    %p150 = scmp.ne.s32.totalorder %s136, %s137
    %p151 = scmp.eq.s32.totalorder %s25, 1
    %p152 = por %p150, %p151
    %p154 = scmp.ne.s32.totalorder %s137, %s153
    %p155 = scmp.eq.s32.totalorder %s25, 0
    %p156 = por %p154, %p155
    %s157 = ssub.s32 %s19, %s26
    %p158 = scmp.eq.s32.totalorder %s157, 0
    %s160 = sadd.s32 %s159, 1
    %s161 = scalar_select %p158, %s159, %s160
    %p164 = pneg %p158
    %p165 = scmp.eq.s32.totalorder %s19, 1
    %p166 = por %p164, %p165
    %p167 = scmp.ne.s32.totalorder %s159, %s162
    %p168 = scmp.eq.s32.totalorder %s19, 0
    %p169 = por %p167, %p168
    %p170 = scmp.ne.s32.totalorder %s159, %s162
    %p171 = scmp.eq.s32.totalorder %s24, 1
    %p172 = por %p170, %p171
    %p173 = scmp.ne.s32.totalorder %s162, %s163
    %p174 = scmp.eq.s32.totalorder %s24, 0
    %p175 = por %p173, %p174
    %p176 = scmp.ne.s32.totalorder %s162, %s163
    %p177 = scmp.eq.s32.totalorder %s25, 1
    %p178 = por %p176, %p177
    %p180 = scmp.ne.s32.totalorder %s163, %s179
    %p181 = scmp.eq.s32.totalorder %s25, 0
    %p182 = por %p180, %p181
    %s183 = ssub.s32 %s19, %s26
    %p184 = scmp.eq.s32.totalorder %s183, 0
    %s186 = sadd.s32 %s185, 1
    %s187 = scalar_select %p184, %s185, %s186
    %p190 = pneg %p184
    %p191 = scmp.eq.s32.totalorder %s19, 1
    %p192 = por %p190, %p191
    %p193 = scmp.ne.s32.totalorder %s185, %s188
    %p194 = scmp.eq.s32.totalorder %s19, 0
    %p195 = por %p193, %p194
    %p196 = scmp.ne.s32.totalorder %s185, %s188
    %p197 = scmp.eq.s32.totalorder %s24, 1
    %p198 = por %p196, %p197
    %p199 = scmp.ne.s32.totalorder %s188, %s189
    %p200 = scmp.eq.s32.totalorder %s24, 0
    %p201 = por %p199, %p200
    %p202 = scmp.ne.s32.totalorder %s188, %s189
    %p203 = scmp.eq.s32.totalorder %s25, 1
    %p204 = por %p202, %p203
    %p206 = scmp.ne.s32.totalorder %s189, %s205
    %p207 = scmp.eq.s32.totalorder %s25, 0
    %p208 = por %p206, %p207
    %p209 = scmp.le.s32.totalorder 1, %s19
    %p210 = scmp.lt.s32.totalorder %s19, 3
    %p211 = pnand %p209, %p210
    %p212 = pneg %p211
    // Predicated region
    $region9: #{trajpre_local_attn_long_forward.2} parent=5 // pred_check
      _
    $region10: #{trajpre_local_attn_long_forward.2} parent=5 // pred_check_branch
      %214 = sbr.rel (%p211) target = $region12
    $region11: #{trajpre_local_attn_long_forward.2} parent=5 // pred_region
      %s215 = ssub.s32 %s19, 1
    $region12: #{trajpre_local_attn_long_forward.2} parent=5 // pred_fallthru
      _
    %p216 = scmp.lt.s32.totalorder %s19, 2
    // Predicated region
    $region13: #{trajpre_local_attn_long_forward.2} parent=5 // pred_check
      %p217 = pneg %p216
    $region14: #{trajpre_local_attn_long_forward.2} parent=5 // pred_check_branch
      %219 = sbr.rel (%p217) target = $region16
    $region15: #{trajpre_local_attn_long_forward.2} parent=5 // pred_region
      // Predicated region
      $region17: #{trajpre_local_attn_long_forward.2} parent=15 // pred_check
        %p220 = pneg %p39
      $region18: #{trajpre_local_attn_long_forward.2} parent=15 // pred_check_branch
        %222 = sbr.rel (%p220) target = $region20
      $region19: #{trajpre_local_attn_long_forward.2} parent=15 // pred_region
        %p223 = scmp.lt.s32.totalorder %s19, 1
        %s224 = scalar_select %p223, %s19, 1
        %s225 = smul.addr %s224, 8
        %s226 = scalar_lea.vmem %s1, %s225
      $region20: #{trajpre_local_attn_long_forward.2} parent=15 // pred_fallthru
        _
      // Predicated region
      $region21: #{trajpre_local_attn_long_forward.2} parent=15 // pred_check
        %p227 = pneg %p65
      $region22: #{trajpre_local_attn_long_forward.2} parent=15 // pred_check_branch
        %229 = sbr.rel (%p227) target = $region24
      $region23: #{trajpre_local_attn_long_forward.2} parent=15 // pred_region
        %p230 = scmp.lt.s32.totalorder %s19, 1
        %s231 = scalar_select %p230, %s19, 1
        %s232 = smul.addr %s231, 12
        %s233 = smul.addr %s232, 4
        %s234 = scalar_lea.vmem %s2, %s233
      $region24: #{trajpre_local_attn_long_forward.2} parent=15 // pred_fallthru
        _
      // Predicated region
      $region25: #{trajpre_local_attn_long_forward.2} parent=15 // pred_check
        %p235 = pneg %p91
      $region26: #{trajpre_local_attn_long_forward.2} parent=15 // pred_check_branch
        %237 = sbr.rel (%p235) target = $region28
      $region27: #{trajpre_local_attn_long_forward.2} parent=15 // pred_region
        %p238 = scmp.lt.s32.totalorder %s19, 1
        %s239 = scalar_select %p238, %s19, 1
        %s240 = smul.addr %s239, 18
        %s241 = smul.addr %s240, 4
        %s242 = scalar_lea.vmem %s3, %s241
      $region28: #{trajpre_local_attn_long_forward.2} parent=15 // pred_fallthru
        _
      // Predicated region
      $region29: #{trajpre_local_attn_long_forward.2} parent=15 // pred_check
        %p243 = pneg %p117
      $region30: #{trajpre_local_attn_long_forward.2} parent=15 // pred_check_branch
        %245 = sbr.rel (%p243) target = $region32
      $region31: #{trajpre_local_attn_long_forward.2} parent=15 // pred_region
        %p246 = scmp.lt.s32.totalorder %s19, 1
        %s247 = scalar_select %p246, %s19, 1
        %s248 = smul.addr %s247, 48
        %s249 = smul.addr %s248, 4
        %s250 = scalar_lea.vmem %s4, %s249
      $region32: #{trajpre_local_attn_long_forward.2} parent=15 // pred_fallthru
        _
      // Predicated region
      $region33: #{trajpre_local_attn_long_forward.2} parent=15 // pred_check
        %p251 = pneg %p143
      $region34: #{trajpre_local_attn_long_forward.2} parent=15 // pred_check_branch
        %253 = sbr.rel (%p251) target = $region36
      $region35: #{trajpre_local_attn_long_forward.2} parent=15 // pred_region
        %p254 = scmp.lt.s32.totalorder %s19, 1
        %s255 = scalar_select %p254, %s19, 1
        %s256 = smul.addr %s255, 3
        %s257 = scalar_lea.vmem %s5, %s256
      $region36: #{trajpre_local_attn_long_forward.2} parent=15 // pred_fallthru
        _
      // Predicated region
      $region37: #{trajpre_local_attn_long_forward.2} parent=15 // pred_check
        %p258 = pneg %p169
      $region38: #{trajpre_local_attn_long_forward.2} parent=15 // pred_check_branch
        %260 = sbr.rel (%p258) target = $region40
      $region39: #{trajpre_local_attn_long_forward.2} parent=15 // pred_region
        %p261 = scmp.lt.s32.totalorder %s19, 1
        %s262 = scalar_select %p261, %s19, 1
        %s263 = scalar_lea.vmem %s6, %s262
      $region40: #{trajpre_local_attn_long_forward.2} parent=15 // pred_fallthru
        _
    $region16: #{trajpre_local_attn_long_forward.2} parent=5 // pred_fallthru
      _
    %p264 = scmp.le.s32.totalorder 1, %s19
    %p265 = scmp.lt.s32.totalorder %s19, 3
    %p266 = pnand %p264, %p265
    %p267 = pneg %p266
    // Predicated region
    $region41: #{trajpre_local_attn_long_forward.2} parent=5 // pred_check
      _
    $region42: #{trajpre_local_attn_long_forward.2} parent=5 // pred_check_branch
      %269 = sbr.rel (%p266) target = $region44
    $region43: #{trajpre_local_attn_long_forward.2} parent=5 // pred_region
      %s270 = ssub.s32 %s19, 1
      %p271 = scmp.lt.s32.totalorder %s24, 1
      %s272 = scalar_select %p271, %s24, 1
      %s273 = smul.addr %s272, 8
      %s274 = scalar_lea.vmem %s1, %s273
      %p275 = pneg %p45
      %p276 = pneg %p42
      %p277 = scmp.lt.s32.totalorder %s24, 1
      %s278 = scalar_select %p277, %s24, 1
      %s279 = smul.addr %s278, 12
      %s280 = smul.addr %s279, 4
      %s281 = scalar_lea.vmem %s2, %s280
      %p282 = pneg %p71
      %p283 = pneg %p68
      %p284 = scmp.lt.s32.totalorder %s24, 1
      %s285 = scalar_select %p284, %s24, 1
      %s286 = smul.addr %s285, 18
      %s287 = smul.addr %s286, 4
      %s288 = scalar_lea.vmem %s3, %s287
      %p289 = pneg %p97
      %p290 = pneg %p94
      %p291 = scmp.lt.s32.totalorder %s24, 1
      %s292 = scalar_select %p291, %s24, 1
      %s293 = smul.addr %s292, 48
      %s294 = smul.addr %s293, 4
      %s295 = scalar_lea.vmem %s4, %s294
      %p296 = pneg %p123
      %p297 = pneg %p120
      %p298 = scmp.lt.s32.totalorder %s24, 1
      %s299 = scalar_select %p298, %s24, 1
      %s300 = smul.addr %s299, 3
      %s301 = scalar_lea.vmem %s5, %s300
      %p302 = pneg %p149
      %p303 = pneg %p146
      %p304 = scmp.lt.s32.totalorder %s24, 1
      %s305 = scalar_select %p304, %s24, 1
      %s306 = scalar_lea.vmem %s6, %s305
      %p307 = pneg %p175
      %p308 = pneg %p172
      %p309 = pneg %p201
      %p310 = pneg %p198
      %p311 = scmp.lt.s32.totalorder %s24, 1
      %s312 = scalar_select %p311, %s24, 1
      %s313 = smul.addr %s312, 12
      %s314 = smul.addr %s313, 8
      %s315 = scalar_lea.vmem %s7, %s314
      %p316 = scmp.lt.s32.totalorder %s24, 1
      %s317 = scalar_select %p316, %s24, 1
      %s318 = smul.addr %s317, 8
      %s319 = scalar_lea.vmem %s1, %s318
      %p320 = scmp.lt.s32.totalorder %s24, 1
      %s321 = scalar_select %p320, %s24, 1
      %s322 = smul.addr %s321, 12
      %s323 = smul.addr %s322, 4
      %s324 = scalar_lea.vmem %s2, %s323
      %p325 = scmp.lt.s32.totalorder %s24, 1
      %s326 = scalar_select %p325, %s24, 1
      %s327 = smul.addr %s326, 18
      %s328 = smul.addr %s327, 4
      %s329 = scalar_lea.vmem %s3, %s328
      %p330 = scmp.lt.s32.totalorder %s24, 1
      %s331 = scalar_select %p330, %s24, 1
      %s332 = smul.addr %s331, 48
      %s333 = smul.addr %s332, 4
      %s334 = scalar_lea.vmem %s4, %s333
      %p335 = scmp.lt.s32.totalorder %s24, 1
      %s336 = scalar_select %p335, %s24, 1
      %s337 = smul.addr %s336, 3
      %s338 = scalar_lea.vmem %s5, %s337
      %p339 = scmp.lt.s32.totalorder %s24, 1
      %s340 = scalar_select %p339, %s24, 1
      %s341 = scalar_lea.vmem %s6, %s340
      %p342 = scmp.lt.s32.totalorder %s24, 1
      %s343 = scalar_select %p342, %s24, 1
      %s344 = smul.addr %s343, 12
      %s345 = smul.addr %s344, 8
      %s346 = scalar_lea.vmem %s7, %s345
      %v348 = vld [vmem:[%s319] sm:$0xff]
      %v349 = vld [vmem:[%s334] sm:$0xff]
      %v350 = vld [vmem:[%s334 + $0x8] sm:$0xf]
      %v351 = vld [vmem:[%s334 + $0xc] sm:$0xff]
      %v352 = vld [vmem:[%s334 + $0x14] sm:$0xf]
      %v353 = vld [vmem:[%s334 + $0x18] sm:$0xff]
      %v354 = vld [vmem:[%s334 + $0x20] sm:$0xf]
      %v355 = vld [vmem:[%s334 + $0x24] sm:$0xff]
      %v356 = vld [vmem:[%s334 + $0x2c] sm:$0xf]
      %v357 = vld [vmem:[%s334 + $0x30] sm:$0xff]
      %v358 = vld [vmem:[%s334 + $0x38] sm:$0xf]
      %v359 = vld [vmem:[%s334 + $0x3c] sm:$0xff]
      %v360 = vld [vmem:[%s334 + $0x44] sm:$0xf]
      %v361 = vld [vmem:[%s334 + $0x48] sm:$0xff]
      %v362 = vld [vmem:[%s334 + $0x50] sm:$0xf]
      %v363 = vld [vmem:[%s334 + $0x54] sm:$0xff]
      %v364 = vld [vmem:[%s334 + $0x5c] sm:$0xf]
      %v365 = vld [vmem:[%s334 + $0x60] sm:$0xff]
      %v366 = vld [vmem:[%s334 + $0x68] sm:$0xf]
      %v367 = vld [vmem:[%s334 + $0x6c] sm:$0xff]
      %v368 = vld [vmem:[%s334 + $0x74] sm:$0xf]
      %v369 = vld [vmem:[%s334 + $0x78] sm:$0xff]
      %v370 = vld [vmem:[%s334 + $0x80] sm:$0xf]
      %v371 = vld [vmem:[%s334 + $0x84] sm:$0xff]
      %v372 = vld [vmem:[%s334 + $0x8c] sm:$0xf]
      %v373 = vld [vmem:[%s334 + $0x90] sm:$0xff]
      %v374 = vld [vmem:[%s334 + $0x98] sm:$0xf]
      %v375 = vld [vmem:[%s334 + $0x9c] sm:$0xff]
      %v376 = vld [vmem:[%s334 + $0xa4] sm:$0xf]
      %v377 = vld [vmem:[%s334 + $0xa8] sm:$0xff]
      %v378 = vld [vmem:[%s334 + $0xb0] sm:$0xf]
      %v379 = vld [vmem:[%s334 + $0xb4] sm:$0xff]
      %v380 = vld [vmem:[%s334 + $0xbc] sm:$0xf]
      %v381 = vld [vmem:[%s341] sm:$0x1]
      %v382 = vld [vmem:[%s324] sm:$0xf]
      %v383 = vld [vmem:[%s324 + $0x4] sm:$0xf]
      %v384 = vld [vmem:[%s324 + $0x8] sm:$0xf]
      %v385 = vld [vmem:[%s324 + $0xc] sm:$0xf]
      %v386 = vld [vmem:[%s324 + $0x10] sm:$0xf]
      %v387 = vld [vmem:[%s324 + $0x14] sm:$0xf]
      %v388 = vld [vmem:[%s324 + $0x18] sm:$0xf]
      %v389 = vld [vmem:[%s324 + $0x1c] sm:$0xf]
      %v390 = vld [vmem:[%s324 + $0x20] sm:$0xf]
      %v391 = vld [vmem:[%s324 + $0x24] sm:$0xf]
      %v392 = vld [vmem:[%s324 + $0x28] sm:$0xf]
      %v393 = vld [vmem:[%s324 + $0x2c] sm:$0xf]
      %v394 = vld [vmem:[%s329] sm:$0xff]
      %v395 = vld [vmem:[%s329 + $0x8] sm:$0xf]
      %v396 = vld [vmem:[%s329 + $0xc] sm:$0xff]
      %v397 = vld [vmem:[%s329 + $0x14] sm:$0xf]
      %v398 = vld [vmem:[%s329 + $0x18] sm:$0xff]
      %v399 = vld [vmem:[%s329 + $0x20] sm:$0xf]
      %v400 = vld [vmem:[%s329 + $0x24] sm:$0xff]
      %v401 = vld [vmem:[%s329 + $0x2c] sm:$0xf]
      %v402 = vld [vmem:[%s329 + $0x30] sm:$0xff]
      %v403 = vld [vmem:[%s329 + $0x38] sm:$0xf]
      %v404 = vld [vmem:[%s329 + $0x3c] sm:$0xff]
      %v405 = vld [vmem:[%s329 + $0x44] sm:$0xf]
      %v406 = vld [vmem:[%s338] sm:$0x7]
      %v408 = vlaneseq
      %v409 = vshrl.u32 %v408, 7
      %v410 = vsub.s32 0, %v409
      %v411 = vrot.slane %v406, %v410
      %v412 = vlaneseq
      %v413 = vshrl.u32 %v412, 7
      %v414 = vsub.s32 1, %v413
      %v415 = vrot.slane %v406, %v414
      %v416 = vlaneseq
      %v417 = vshrl.u32 %v416, 7
      %v418 = vsub.s32 2, %v417
      %v419 = vrot.slane %v406, %v418
      %v435 = vunpack.c.l.b16 %v382
      %v436 = vunpack.c.l.b16 %v383
      %v437 = vunpack.c.l.b16 %v384
      %v438 = vunpack.c.l.b16 %v385
      %v439 = vunpack.c.l.b16 %v386
      %v440 = vunpack.c.l.b16 %v387
      %v441 = vunpack.c.l.b16 %v388
      %v442 = vunpack.c.l.b16 %v389
      %v443 = vunpack.c.l.b16 %v390
      %v444 = vunpack.c.l.b16 %v391
      %v445 = vunpack.c.l.b16 %v392
      %v446 = vunpack.c.l.b16 %v393
      %v447 = vpack.c.b16 %v436, %v435
      %v448 = vpack.c.b16 %v438, %v437
      %v449 = vpack.c.b16 %v440, %v439
      %v450 = vpack.c.b16 %v442, %v441
      %v451 = vpack.c.b16 %v444, %v443
      %v452 = vpack.c.b16 %v446, %v445
      %v465 = vunpack.c.l.b16 %v394
      %v466 = vunpack.c.h.b16 %v394
      %v467 = vunpack.c.l.b16 %v395
      %v468 = vunpack.c.l.b16 %v396
      %v469 = vunpack.c.h.b16 %v396
      %v470 = vunpack.c.l.b16 %v397
      %v471 = vunpack.c.l.b16 %v398
      %v472 = vunpack.c.h.b16 %v398
      %v473 = vunpack.c.l.b16 %v399
      %v474 = vunpack.c.l.b16 %v400
      %v475 = vunpack.c.h.b16 %v400
      %v476 = vunpack.c.l.b16 %v401
      %v477 = vunpack.c.l.b16 %v402
      %v478 = vunpack.c.h.b16 %v402
      %v479 = vunpack.c.l.b16 %v403
      %v480 = vunpack.c.l.b16 %v404
      %v481 = vunpack.c.h.b16 %v404
      %v482 = vunpack.c.l.b16 %v405
      %v483 = vpack.c.b16 %v468, %v465
      %v484 = vpack.c.b16 %v469, %v466
      %v485 = vpack.c.b16 %v470, %v467
      %v486 = vpack.c.b16 %v474, %v471
      %v487 = vpack.c.b16 %v475, %v472
      %v488 = vpack.c.b16 %v476, %v473
      %v489 = vpack.c.b16 %v480, %v477
      %v490 = vpack.c.b16 %v481, %v478
      %v491 = vpack.c.b16 %v482, %v479
      %vm501 = vcmask 392192
      %v503 = vsel %vm501, %v447, 0
      %v506 = vsel %vm501, %v448, 0
      %v509 = vsel %vm501, %v449, 0
      %v512 = vsel %vm501, %v450, 0
      %v515 = vsel %vm501, %v451, 0
      %v518 = vsel %vm501, %v452, 0
      %520 = vmatprep.subr.bf16.mxu0 %v484
      %521 = vmatpush1.bf16.msra.mxu0 %v483
      %522 = vmatprep.subr.bf16.mxu0 %v487
      %523 = vmatpush1.bf16.msra.mxu0 %v486
      %524 = vmatprep.subr.bf16.mxu0 %v490
      %525 = vmatpush1.bf16.msra.mxu0 %v489
      %526 = vmatprep.subr.bf16.mxu0 0
      %527 = vmatpush1.bf16.msra.mxu0 0
      %528 = vmatprep.subr.bf16.mxu0 0
      %529 = vmatpush1.bf16.msra.mxu0 0
      %530 = vmatprep.subr.bf16.mxu0 0
      %531 = vmatpush1.bf16.msra.mxu0 0
      %532 = vmatprep.subr.bf16.mxu0 0
      %533 = vmatpush1.bf16.msra.mxu0 0
      %534 = vmatprep.subr.bf16.mxu0 0
      %535 = vmatpush1.bf16.msra.mxu0 0
      %536 = vmatprep.subr.bf16.mxu0 0
      %537 = vmatpush1.bf16.msra.mxu0 0
      %538 = vmatprep.subr.bf16.mxu0 0
      %539 = vmatpush1.bf16.msra.mxu0 0
      %540 = vmatprep.subr.bf16.mxu0 0
      %541 = vmatpush1.bf16.msra.mxu0 0
      %542 = vmatprep.subr.bf16.mxu0 0
      %543 = vmatpush1.bf16.msra.mxu0 0
      %544 = vmatprep.subr.bf16.mxu0 0
      %545 = vmatpush1.bf16.msra.mxu0 0
      %546 = vmatprep.subr.bf16.mxu0 0
      %547 = vmatpush1.bf16.msra.mxu0 0
      %548 = vmatprep.subr.bf16.mxu0 0
      %549 = vmatpush1.bf16.msra.mxu0 0
      %550 = vmatprep.subr.bf16.mxu0 0
      %551 = vmatpush1.bf16.msra.mxu0 0
      %552 = vmatprep.mubr.bf16.mxu0 0
      %553 = vmatmul.mubr.bf16.gmra.mrb[0].mxu0 %v503
      %v554 = vpop.f32.mrb[0].mxu0
      %v555 = vadd.f32 %v411, %v554
      %v556 = vpop.f32.mrb[0].mxu0
      %v557 = vadd.f32 %v415, %v556
      %v558 = vpop.f32.mrb[0].mxu0
      %v559 = vadd.f32 %v411, %v558
      %v560 = vpop.f32.mrb[0].mxu0
      %v561 = vadd.f32 %v415, %v560
      %562 = vmatprep.mubr.bf16.mxu0 0
      %563 = vmatmul.mubr.bf16.gmra.mrb[0].mxu0 %v506
      %v564 = vpop.f32.mrb[0].mxu0
      %v565 = vadd.f32 %v411, %v564
      %v566 = vpop.f32.mrb[0].mxu0
      %v567 = vadd.f32 %v415, %v566
      %v568 = vpop.f32.mrb[0].mxu0
      %v569 = vadd.f32 %v411, %v568
      %v570 = vpop.f32.mrb[0].mxu0
      %v571 = vadd.f32 %v415, %v570
      %572 = vmatprep.mubr.bf16.mxu0 0
      %573 = vmatmul.mubr.bf16.gmra.mrb[0].mxu0 %v509
      %v574 = vpop.f32.mrb[0].mxu0
      %v575 = vadd.f32 %v411, %v574
      %v576 = vpop.f32.mrb[0].mxu0
      %v577 = vadd.f32 %v415, %v576
      %v578 = vpop.f32.mrb[0].mxu0
      %v579 = vadd.f32 %v411, %v578
      %v580 = vpop.f32.mrb[0].mxu0
      %v581 = vadd.f32 %v415, %v580
      %582 = vmatprep.mubr.bf16.mxu0 0
      %583 = vmatmul.mubr.bf16.gmra.mrb[0].mxu0 %v512
      %v584 = vpop.f32.mrb[0].mxu0
      %v585 = vadd.f32 %v411, %v584
      %v586 = vpop.f32.mrb[0].mxu0
      %v587 = vadd.f32 %v415, %v586
      %v588 = vpop.f32.mrb[0].mxu0
      %v589 = vadd.f32 %v411, %v588
      %v590 = vpop.f32.mrb[0].mxu0
      %v591 = vadd.f32 %v415, %v590
      %592 = vmatprep.mubr.bf16.mxu0 0
      %593 = vmatmul.mubr.bf16.gmra.mrb[0].mxu0 %v515
      %v594 = vpop.f32.mrb[0].mxu0
      %v595 = vadd.f32 %v411, %v594
      %v596 = vpop.f32.mrb[0].mxu0
      %v597 = vadd.f32 %v415, %v596
      %v598 = vpop.f32.mrb[0].mxu0
      %v599 = vadd.f32 %v411, %v598
      %v600 = vpop.f32.mrb[0].mxu0
      %v601 = vadd.f32 %v415, %v600
      %602 = vmatprep.mubr.bf16.mxu0 0
      %603 = vmatmul.mubr.bf16.gmra.mrb[0].mxu0 %v518
      %v604 = vpop.f32.mrb[0].mxu0
      %v605 = vadd.f32 %v411, %v604
      %v606 = vpop.f32.mrb[0].mxu0
      %v607 = vadd.f32 %v415, %v606
      %v608 = vpop.f32.mrb[0].mxu0
      %v609 = vadd.f32 %v411, %v608
      %v610 = vpop.f32.mrb[0].mxu0
      %v611 = vadd.f32 %v415, %v610
      %612 = vdwg.mxu0
      %613 = vmatprep.subr.bf16.mxu0 0
      %614 = vmatpush1.bf16.msra.mxu0 %v485
      %615 = vmatprep.subr.bf16.mxu0 0
      %616 = vmatpush1.bf16.msra.mxu0 %v488
      %617 = vmatprep.subr.bf16.mxu0 0
      %618 = vmatpush1.bf16.msra.mxu0 %v491
      %619 = vmatprep.subr.bf16.mxu0 0
      %620 = vmatpush1.bf16.msra.mxu0 0
      %621 = vmatprep.subr.bf16.mxu0 0
      %622 = vmatpush1.bf16.msra.mxu0 0
      %623 = vmatprep.subr.bf16.mxu0 0
      %624 = vmatpush1.bf16.msra.mxu0 0
      %625 = vmatprep.subr.bf16.mxu0 0
      %626 = vmatpush1.bf16.msra.mxu0 0
      %627 = vmatprep.subr.bf16.mxu0 0
      %628 = vmatpush1.bf16.msra.mxu0 0
      %629 = vmatprep.subr.bf16.mxu0 0
      %630 = vmatpush1.bf16.msra.mxu0 0
      %631 = vmatprep.subr.bf16.mxu0 0
      %632 = vmatpush1.bf16.msra.mxu0 0
      %633 = vmatprep.subr.bf16.mxu0 0
      %634 = vmatpush1.bf16.msra.mxu0 0
      %635 = vmatprep.subr.bf16.mxu0 0
      %636 = vmatpush1.bf16.msra.mxu0 0
      %637 = vmatprep.subr.bf16.mxu0 0
      %638 = vmatpush1.bf16.msra.mxu0 0
      %639 = vmatprep.subr.bf16.mxu0 0
      %640 = vmatpush1.bf16.msra.mxu0 0
      %641 = vmatprep.subr.bf16.mxu0 0
      %642 = vmatpush1.bf16.msra.mxu0 0
      %643 = vmatprep.subr.bf16.mxu0 0
      %644 = vmatpush1.bf16.msra.mxu0 0
      %645 = vmatprep.mubr.bf16.mxu0 0
      %646 = vmatmul.mubr.bf16.gmra.mrb[0].mxu0 %v503
      %v647 = vpop.f32.mrb[0].mxu0
      %v648 = vadd.f32 %v419, %v647
      %v649 = vpop.f32.mrb[0].mxu0
      %v650 = vpop.f32.mrb[0].mxu0
      %v651 = vadd.f32 %v419, %v650
      %v652 = vpop.f32.mrb[0].mxu0
      %653 = vmatprep.mubr.bf16.mxu0 0
      %654 = vmatmul.mubr.bf16.gmra.mrb[0].mxu0 %v506
      %v655 = vpop.f32.mrb[0].mxu0
      %v656 = vadd.f32 %v419, %v655
      %v657 = vpop.f32.mrb[0].mxu0
      %v658 = vpop.f32.mrb[0].mxu0
      %v659 = vadd.f32 %v419, %v658
      %v660 = vpop.f32.mrb[0].mxu0
      %661 = vmatprep.mubr.bf16.mxu0 0
      %662 = vmatmul.mubr.bf16.gmra.mrb[0].mxu0 %v509
      %v663 = vpop.f32.mrb[0].mxu0
      %v664 = vadd.f32 %v419, %v663
      %v665 = vpop.f32.mrb[0].mxu0
      %v666 = vpop.f32.mrb[0].mxu0
      %v667 = vadd.f32 %v419, %v666
      %v668 = vpop.f32.mrb[0].mxu0
      %669 = vmatprep.mubr.bf16.mxu0 0
      %670 = vmatmul.mubr.bf16.gmra.mrb[0].mxu0 %v512
      %v671 = vpop.f32.mrb[0].mxu0
      %v672 = vadd.f32 %v419, %v671
      %v673 = vpop.f32.mrb[0].mxu0
      %v674 = vpop.f32.mrb[0].mxu0
      %v675 = vadd.f32 %v419, %v674
      %v676 = vpop.f32.mrb[0].mxu0
      %677 = vmatprep.mubr.bf16.mxu0 0
      %678 = vmatmul.mubr.bf16.gmra.mrb[0].mxu0 %v515
      %v679 = vpop.f32.mrb[0].mxu0
      %v680 = vadd.f32 %v419, %v679
      %v681 = vpop.f32.mrb[0].mxu0
      %v682 = vpop.f32.mrb[0].mxu0
      %v683 = vadd.f32 %v419, %v682
      %v684 = vpop.f32.mrb[0].mxu0
      %685 = vmatprep.mubr.bf16.mxu0 0
      %686 = vmatmul.mubr.bf16.gmra.mrb[0].mxu0 %v518
      %v687 = vpop.f32.mrb[0].mxu0
      %v688 = vadd.f32 %v419, %v687
      %v689 = vpop.f32.mrb[0].mxu0
      %v690 = vpop.f32.mrb[0].mxu0
      %v691 = vadd.f32 %v419, %v690
      %v692 = vpop.f32.mrb[0].mxu0
      %693 = vdwg.mxu0
      %694 = vst [vmem:[#allocation2] sm:$0xff] %v555
      %695 = vst [vmem:[#allocation2 + $0x8] sm:$0xff] %v557
      %696 = vst [vmem:[#allocation2 + $0x10] sm:$0xff] %v648
      %697 = vst [vmem:[#allocation2 + $0x18] sm:$0xff] %v559
      %698 = vst [vmem:[#allocation2 + $0x20] sm:$0xff] %v561
      %699 = vst [vmem:[#allocation2 + $0x28] sm:$0xff] %v651
      %700 = vst [vmem:[#allocation2 + $0x30] sm:$0xff] %v565
      %701 = vst [vmem:[#allocation2 + $0x38] sm:$0xff] %v567
      %702 = vst [vmem:[#allocation2 + $0x40] sm:$0xff] %v656
      %703 = vst [vmem:[#allocation2 + $0x48] sm:$0xff] %v569
      %704 = vst [vmem:[#allocation2 + $0x50] sm:$0xff] %v571
      %705 = vst [vmem:[#allocation2 + $0x58] sm:$0xff] %v659
      %706 = vst [vmem:[#allocation2 + $0x60] sm:$0xff] %v575
      %707 = vst [vmem:[#allocation2 + $0x68] sm:$0xff] %v577
      %708 = vst [vmem:[#allocation2 + $0x70] sm:$0xff] %v664
      %709 = vst [vmem:[#allocation2 + $0x78] sm:$0xff] %v579
      %710 = vst [vmem:[#allocation2 + $0x80] sm:$0xff] %v581
      %711 = vst [vmem:[#allocation2 + $0x88] sm:$0xff] %v667
      %712 = vst [vmem:[#allocation2 + $0x90] sm:$0xff] %v585
      %713 = vst [vmem:[#allocation2 + $0x98] sm:$0xff] %v587
      %714 = vst [vmem:[#allocation2 + $0xa0] sm:$0xff] %v672
      %715 = vst [vmem:[#allocation2 + $0xa8] sm:$0xff] %v589
      %716 = vst [vmem:[#allocation2 + $0xb0] sm:$0xff] %v591
      %717 = vst [vmem:[#allocation2 + $0xb8] sm:$0xff] %v675
      %718 = vst [vmem:[#allocation2 + $0xc0] sm:$0xff] %v595
      %719 = vst [vmem:[#allocation2 + $0xc8] sm:$0xff] %v597
      %720 = vst [vmem:[#allocation2 + $0xd0] sm:$0xff] %v680
      %721 = vst [vmem:[#allocation2 + $0xd8] sm:$0xff] %v599
      %722 = vst [vmem:[#allocation2 + $0xe0] sm:$0xff] %v601
      %723 = vst [vmem:[#allocation2 + $0xe8] sm:$0xff] %v683
      %724 = vst [vmem:[#allocation2 + $0xf0] sm:$0xff] %v605
      %725 = vst [vmem:[#allocation2 + $0xf8] sm:$0xff] %v607
      %726 = vst [vmem:[#allocation2 + $0x100] sm:$0xff] %v688
      %727 = vst [vmem:[#allocation2 + $0x108] sm:$0xff] %v609
      %728 = vst [vmem:[#allocation2 + $0x110] sm:$0xff] %v611
      %729 = vst [vmem:[#allocation2 + $0x118] sm:$0xff] %v691
      %730 = vst [vmem:[#allocation3] sm:$0xff] 0.0
      %s731 = sld [smem:[#allocation5 + %s24]]
      // While loop
      $region45: #{trajpre_local_attn_long_forward.2} parent=43 // loop_pre_header
        _
      $region46: #{trajpre_local_attn_long_forward.2} parent=43 // loop_header
        %s733 = sphi 0, %s735
        %p734 = scmp.ge.s32.totalorder %s733, %s731
      $region47: #{trajpre_local_attn_long_forward.2} parent=43 // loop_header_branch
        %737 = sbr.rel (%p734) target = $region51
      $region48: #{trajpre_local_attn_long_forward.2} parent=43 // loop_body
        %v738 = vld [vmem:[#allocation3] sm:$0xff]
        %s739 = smul.u32 %s733, 8
        %s740 = sshra.s32 %s739, 3
        %s741 = sand.u32 %s739, 7
        %s742 = smul.u32 %s740, 3
        %s743 = smul.addr %s742, 8
        %s744 = scalar_lea.vmem [#allocation2], %s743
        %v745 = vld [vmem:[%s744] sm:$0xff]
        %v746 = vld [vmem:[%s744 + $0x8] sm:$0xff]
        %v747 = vld [vmem:[%s744 + $0x10] sm:$0xff]
        %v748 = vpack.c.bf16 %v738, %v738
        %v781 = vunpack.c.l.b16 %v349
        %v782 = vunpack.c.h.b16 %v349
        %v783 = vunpack.c.l.b16 %v350
        %v784 = vunpack.c.l.b16 %v351
        %v785 = vunpack.c.h.b16 %v351
        %v786 = vunpack.c.l.b16 %v352
        %v787 = vunpack.c.l.b16 %v353
        %v788 = vunpack.c.h.b16 %v353
        %v789 = vunpack.c.l.b16 %v354
        %v790 = vunpack.c.l.b16 %v355
        %v791 = vunpack.c.h.b16 %v355
        %v792 = vunpack.c.l.b16 %v356
        %v793 = vunpack.c.l.b16 %v357
        %v794 = vunpack.c.h.b16 %v357
        %v795 = vunpack.c.l.b16 %v358
        %v796 = vunpack.c.l.b16 %v359
        %v797 = vunpack.c.h.b16 %v359
        %v798 = vunpack.c.l.b16 %v360
        %v799 = vunpack.c.l.b16 %v361
        %v800 = vunpack.c.h.b16 %v361
        %v801 = vunpack.c.l.b16 %v362
        %v802 = vunpack.c.l.b16 %v363
        %v803 = vunpack.c.h.b16 %v363
        %v804 = vunpack.c.l.b16 %v364
        %v805 = vunpack.c.l.b16 %v365
        %v806 = vunpack.c.h.b16 %v365
        %v807 = vunpack.c.l.b16 %v366
        %v808 = vunpack.c.l.b16 %v367
        %v809 = vunpack.c.h.b16 %v367
        %v810 = vunpack.c.l.b16 %v368
        %v811 = vunpack.c.l.b16 %v369
        %v812 = vunpack.c.h.b16 %v369
        %v813 = vunpack.c.l.b16 %v370
        %v814 = vunpack.c.l.b16 %v371
        %v815 = vunpack.c.h.b16 %v371
        %v816 = vunpack.c.l.b16 %v372
        %v817 = vunpack.c.l.b16 %v373
        %v818 = vunpack.c.h.b16 %v373
        %v819 = vunpack.c.l.b16 %v374
        %v820 = vunpack.c.l.b16 %v375
        %v821 = vunpack.c.h.b16 %v375
        %v822 = vunpack.c.l.b16 %v376
        %v823 = vunpack.c.l.b16 %v377
        %v824 = vunpack.c.h.b16 %v377
        %v825 = vunpack.c.l.b16 %v378
        %v826 = vunpack.c.l.b16 %v379
        %v827 = vunpack.c.h.b16 %v379
        %v828 = vunpack.c.l.b16 %v380
        %v829 = vpack.c.b16 %v784, %v781
        %v830 = vpack.c.b16 %v785, %v782
        %v831 = vpack.c.b16 %v786, %v783
        %v832 = vpack.c.b16 %v790, %v787
        %v833 = vpack.c.b16 %v791, %v788
        %v834 = vpack.c.b16 %v792, %v789
        %v835 = vpack.c.b16 %v796, %v793
        %v836 = vpack.c.b16 %v797, %v794
        %v837 = vpack.c.b16 %v798, %v795
        %v838 = vpack.c.b16 %v802, %v799
        %v839 = vpack.c.b16 %v803, %v800
        %v840 = vpack.c.b16 %v804, %v801
        %v841 = vpack.c.b16 %v808, %v805
        %v842 = vpack.c.b16 %v809, %v806
        %v843 = vpack.c.b16 %v810, %v807
        %v844 = vpack.c.b16 %v814, %v811
        %v845 = vpack.c.b16 %v815, %v812
        %v846 = vpack.c.b16 %v816, %v813
        %v847 = vpack.c.b16 %v820, %v817
        %v848 = vpack.c.b16 %v821, %v818
        %v849 = vpack.c.b16 %v822, %v819
        %v850 = vpack.c.b16 %v826, %v823
        %v851 = vpack.c.b16 %v827, %v824
        %v852 = vpack.c.b16 %v828, %v825
        %877 = vmatprep.subr.bf16.mxu0 %v830
        %878 = vmatpush1.bf16.msra.mxu0 %v829
        %879 = vmatprep.subr.bf16.mxu0 %v833
        %880 = vmatpush1.bf16.msra.mxu0 %v832
        %881 = vmatprep.subr.bf16.mxu0 %v836
        %882 = vmatpush1.bf16.msra.mxu0 %v835
        %883 = vmatprep.subr.bf16.mxu0 %v839
        %884 = vmatpush1.bf16.msra.mxu0 %v838
        %885 = vmatprep.subr.bf16.mxu0 %v842
        %886 = vmatpush1.bf16.msra.mxu0 %v841
        %887 = vmatprep.subr.bf16.mxu0 %v845
        %888 = vmatpush1.bf16.msra.mxu0 %v844
        %889 = vmatprep.subr.bf16.mxu0 %v848
        %890 = vmatpush1.bf16.msra.mxu0 %v847
        %891 = vmatprep.subr.bf16.mxu0 %v851
        %892 = vmatpush1.bf16.msra.mxu0 %v850
        %893 = vmatprep.subr.bf16.mxu0 0
        %894 = vmatpush1.bf16.msra.mxu0 0
        %895 = vmatprep.subr.bf16.mxu0 0
        %896 = vmatpush1.bf16.msra.mxu0 0
        %897 = vmatprep.subr.bf16.mxu0 0
        %898 = vmatpush1.bf16.msra.mxu0 0
        %899 = vmatprep.subr.bf16.mxu0 0
        %900 = vmatpush1.bf16.msra.mxu0 0
        %901 = vmatprep.subr.bf16.mxu0 0
        %902 = vmatpush1.bf16.msra.mxu0 0
        %903 = vmatprep.subr.bf16.mxu0 0
        %904 = vmatpush1.bf16.msra.mxu0 0
        %905 = vmatprep.subr.bf16.mxu0 0
        %906 = vmatpush1.bf16.msra.mxu0 0
        %907 = vmatprep.subr.bf16.mxu0 0
        %908 = vmatpush1.bf16.msra.mxu0 0
        %909 = vmatprep.mubr.bf16.mxu0 0
        %910 = vmatmul.mubr.bf16.gmra.mrb[0].mxu0 %v748
        %v911 = vpop.f32.mrb[0].mxu0
        %v912 = vadd.f32 0.0, %v911
        %v913 = vpop.f32.mrb[0].mxu0
        %v914 = vadd.f32 0.0, %v913
        %v915 = vpop.f32.mrb[0].mxu0
        %v916 = vpop.f32.mrb[0].mxu0
        %917 = vdwg.mxu0
        %918 = vmatprep.subr.bf16.mxu0 0
        %919 = vmatpush1.bf16.msra.mxu0 %v831
        %920 = vmatprep.subr.bf16.mxu0 0
        %921 = vmatpush1.bf16.msra.mxu0 %v834
        %922 = vmatprep.subr.bf16.mxu0 0
        %923 = vmatpush1.bf16.msra.mxu0 %v837
        %924 = vmatprep.subr.bf16.mxu0 0
        %925 = vmatpush1.bf16.msra.mxu0 %v840
        %926 = vmatprep.subr.bf16.mxu0 0
        %927 = vmatpush1.bf16.msra.mxu0 %v843
        %928 = vmatprep.subr.bf16.mxu0 0
        %929 = vmatpush1.bf16.msra.mxu0 %v846
        %930 = vmatprep.subr.bf16.mxu0 0
        %931 = vmatpush1.bf16.msra.mxu0 %v849
        %932 = vmatprep.subr.bf16.mxu0 0
        %933 = vmatpush1.bf16.msra.mxu0 %v852
        %934 = vmatprep.subr.bf16.mxu0 0
        %935 = vmatpush1.bf16.msra.mxu0 0
        %936 = vmatprep.subr.bf16.mxu0 0
        %937 = vmatpush1.bf16.msra.mxu0 0
        %938 = vmatprep.subr.bf16.mxu0 0
        %939 = vmatpush1.bf16.msra.mxu0 0
        %940 = vmatprep.subr.bf16.mxu0 0
        %941 = vmatpush1.bf16.msra.mxu0 0
        %942 = vmatprep.subr.bf16.mxu0 0
        %943 = vmatpush1.bf16.msra.mxu0 0
        %944 = vmatprep.subr.bf16.mxu0 0
        %945 = vmatpush1.bf16.msra.mxu0 0
        %946 = vmatprep.subr.bf16.mxu0 0
        %947 = vmatpush1.bf16.msra.mxu0 0
        %948 = vmatprep.subr.bf16.mxu0 0
        %949 = vmatpush1.bf16.msra.mxu0 0
        %950 = vmatprep.mubr.bf16.mxu0 0
        %951 = vmatmul.mubr.bf16.gmra.mrb[0].mxu0 %v748
        %v952 = vpop.f32.mrb[0].mxu0
        %v953 = vadd.f32 0.0, %v952
        %v954 = vpop.f32.mrb[0].mxu0
        %v955 = vpop.f32.mrb[0].mxu0
        %v956 = vpop.f32.mrb[0].mxu0
        %957 = vdwg.mxu0
        %v958 = vadd.f32 %v745, %v912
        %v959 = vadd.f32 %v746, %v914
        %v960 = vxor.u32 %v958, 2147483648
        %v961 = vxor.u32 %v959, 2147483648
        %v962 = vmul.f32 %v960, 1.442695
        %v963 = vpow.pop %v962
        %v964 = vmul.f32 %v961, 1.442695
        %v965 = vpow.pop %v964
        %v966 = vadd.f32 %v963, 1.0
        %v967 = vadd.f32 %v965, 1.0
        %v968 = vrcp.pop %v966
        %v969 = vmul.f32 1.0, %v968
        %v970 = vrcp.pop %v967
        %v971 = vmul.f32 1.0, %v970
        %v973 = vlaneseq
        %v974 = vshrl.u32 %v973, 7
        %v975 = vsub.s32 0, %v974
        %v976 = vrot.slane %v381, %v975
        %v978 = vadd.f32 %v953, %v976
        %v979 = vmul.f32 %v969, %v978
        %v980 = vadd.f32 %v747, %v979
        %v981 = vtanh.pop %v980
        %v982 = vsub.f32 1.0, %v971
        %v983 = vmul.f32 %v982, %v981
        %v984 = vmul.f32 %v971, %v738
        %v985 = vadd.f32 %v983, %v984
        %v986 = vstv %s733
        %vm987 = vcmp.lt.s32.totalorder %v986, %v348
        %v988 = vsel %vm987, 1, 0
        %v989 = vcvt.s32.f32 %v988
        %991 = vset.pattern.permute.xlu0 0
        %992 = vperm.xlu0 %991, %v989
        %v993 = vpop.permute.xlu0 %992
        %v995 = vmul.f32 %v993, %v985
        %s996 = scalar_lea.vmem %s346, %s739
        %997 = vst [vmem:[%s996] sm:$0xff] %v995
        %v998 = vsub.f32 1.0, %v989
        %1000 = vset.pattern.permute.xlu0 0
        %1001 = vperm.xlu0 %1000, %v998
        %v1002 = vpop.permute.xlu0 %1001
        %v1004 = vmul.f32 %v1002, %v738
        %v1005 = vadd.f32 %v995, %v1004
        %1006 = vst [vmem:[#allocation3] sm:$0xff] %v1005
      $region49: #{trajpre_local_attn_long_forward.2} parent=43 // loop_footer
        %s735 = sadd.s32 %s733, 1
      $region50: #{trajpre_local_attn_long_forward.2} parent=43 // loop_footer_branch
        %732 = sbr.rel target = $region46
      $region51: #{trajpre_local_attn_long_forward.2} parent=43 // loop_exit
        _
      %p1007 = scmp.lt.s32.totalorder %s24, 1
      %s1008 = scalar_select %p1007, %s24, 1
      %s1009 = smul.addr %s1008, 12
      %s1010 = smul.addr %s1009, 8
      %s1011 = scalar_lea.vmem %s7, %s1010
      // Predicated region
      $region52: #{trajpre_local_attn_long_forward.2} parent=43 // pred_check
        %p1012 = pneg %p198
      $region53: #{trajpre_local_attn_long_forward.2} parent=43 // pred_check_branch
        %1014 = sbr.rel (%p1012) target = $region55
      $region54: #{trajpre_local_attn_long_forward.2} parent=43 // pred_region
        _
      $region55: #{trajpre_local_attn_long_forward.2} parent=43 // pred_fallthru
        _
    $region44: #{trajpre_local_attn_long_forward.2} parent=5 // pred_fallthru
      _
    %p1015 = scmp.le.s32.totalorder 2, %s19
    // Predicated region
    $region56: #{trajpre_local_attn_long_forward.2} parent=5 // pred_check
      %p1016 = pneg %p1015
    $region57: #{trajpre_local_attn_long_forward.2} parent=5 // pred_check_branch
      %1018 = sbr.rel (%p1016) target = $region59
    $region58: #{trajpre_local_attn_long_forward.2} parent=5 // pred_region
      %s1019 = ssub.s32 %s19, 2
      // Predicated region
      $region60: #{trajpre_local_attn_long_forward.2} parent=58 // pred_check
        %p1020 = pneg %p204
      $region61: #{trajpre_local_attn_long_forward.2} parent=58 // pred_check_branch
        %1022 = sbr.rel (%p1020) target = $region63
      $region62: #{trajpre_local_attn_long_forward.2} parent=58 // pred_region
        %p1023 = scmp.lt.s32.totalorder %s25, 1
        %s1024 = scalar_select %p1023, %s25, 1
        %s1025 = smul.addr %s1024, 12
        %s1026 = smul.addr %s1025, 8
        %s1027 = scalar_lea.vmem %s7, %s1026
      $region63: #{trajpre_local_attn_long_forward.2} parent=58 // pred_fallthru
        _
    $region59: #{trajpre_local_attn_long_forward.2} parent=5 // pred_fallthru
      _
  $region6: #{trajpre_local_attn_long_forward.2} parent=0 // loop_footer
    %s23 = sadd.s32 1, %s19
  $region7: #{trajpre_local_attn_long_forward.2} parent=0 // loop_footer_branch
    %18 = sbr.rel target = $region3
  $region8: #{trajpre_local_attn_long_forward.2} parent=0 // loop_exit
    _

</llo_original>
